<compile_context>
chip_gen: v7x
topology: tpu7x:2x2x1
jax: 0.10.0
libtpu: 0.0.40
codegen_flags: <defaults>
</compile_context>

<pallas_src>
import functools
import math

import jax
import jax.numpy as jnp
from jax.experimental import pallas as pl
from jax.experimental.pallas import tpu as pltpu

_MASK_NEG = -1e30  # finite additive causal bias (avoids inf-inf / NaN hazards)


# ---------------------------------------------------------------------------
# elementwise helpers (f32)
# ---------------------------------------------------------------------------
def _layernorm(x, gamma, beta, eps=1e-5):
    mean = jnp.mean(x, axis=-1, keepdims=True)
    var = jnp.mean((x - mean) ** 2, axis=-1, keepdims=True)
    return (x - mean) * jax.lax.rsqrt(var + eps) * gamma + beta


def _gelu_tanh(x):
    # PyTorch nn.GELU(approximate='tanh')
    c = math.sqrt(2.0 / math.pi)
    return 0.5 * x * (1.0 + jnp.tanh(c * (x + 0.044715 * x * x * x)))


# ---------------------------------------------------------------------------
# stage 1: LN1 + c_attn  ->  q (pre-scaled), k, v   (per (batch, query-tile))
# ---------------------------------------------------------------------------
def qkv_kernel(x_ref, ln1_g_ref, ln1_b_ref, w_attn_ref, b_attn_ref,
               q_ref, k_ref, v_ref, *, n_head: int):
    x = x_ref[0]                                   # (bq, C) f32
    C = x.shape[-1]
    hd = C // n_head
    scale = 1.0 / math.sqrt(hd)
    bf16 = jnp.bfloat16

    h = _layernorm(x, ln1_g_ref[...], ln1_b_ref[...])
    qkv = jnp.dot(h.astype(bf16), w_attn_ref[...],
                  preferred_element_type=jnp.float32) + b_attn_ref[...]  # (bq, 3C)
    # fold 1/sqrt(hd) into q here: O(T*C) work, instead of O(H*T^2) on scores
    q_ref[0] = (qkv[:, 0 * C:1 * C] * scale).astype(q_ref.dtype)
    k_ref[0] = qkv[:, 1 * C:2 * C].astype(k_ref.dtype)
    v_ref[0] = qkv[:, 2 * C:3 * C].astype(v_ref.dtype)


# ---------------------------------------------------------------------------
# stage 2: attention (head loop) + c_proj + residual + LN2 + MLP + residual
# ---------------------------------------------------------------------------
def attn_mlp_kernel(x_ref, q_ref, k_ref, v_ref,
                    w_proj_ref, b_proj_ref,
                    ln2_g_ref, ln2_b_ref,
                    w_fc_ref, b_fc_ref,
                    w_mproj_ref, b_mproj_ref,
                    o_ref,
                    qh_s, kh_s, vh_s, yh_s,
                    *, n_head: int):
    f32 = jnp.float32
    bf16 = jnp.bfloat16

    x = x_ref[0]                                   # (bq, C) f32
    bq, C = x.shape
    T = k_ref.shape[1]
    hd = C // n_head

    # ---- single layout-aware head split (one relayout per tensor) ----
    qh_s[...] = jnp.transpose(q_ref[0].reshape(bq, n_head, hd), (1, 0, 2))
    kh_s[...] = jnp.transpose(k_ref[0].reshape(T, n_head, hd), (1, 0, 2))
    vh_s[...] = jnp.transpose(v_ref[0].reshape(T, n_head, hd), (1, 0, 2))

    # additive causal bias, built once per query block (reused by every head)
    q0 = pl.program_id(1) * bq
    row = q0 + jax.lax.broadcasted_iota(jnp.int32, (bq, T), 0)
    col = jax.lax.broadcasted_iota(jnp.int32, (bq, T), 1)
    bias = jnp.where(col <= row, 0.0, _MASK_NEG).astype(f32)   # (bq, T)

    # ---- per-head attention: live score block is only (bq, T) f32 ----
    @pl.loop(0, n_head)
    def _(h):
        s = jax.lax.dot_general(qh_s[h], kh_s[h],
                                (((1,), (1,)), ((), ())),
                                preferred_element_type=f32)    # (bq, T)
        s = s + bias
        s = s - jnp.max(s, axis=-1, keepdims=True)
        p = jnp.exp(s)
        d = jnp.sum(p, axis=-1, keepdims=True)
        r = pl.reciprocal(d, approx=True)
        r = r * (2.0 - d * r)                                  # one Newton step
        p = p * r
        yh_s[h] = jnp.dot(p.astype(bf16), vh_s[h],
                          preferred_element_type=f32)          # (bq, hd)

    # merge heads back to a lane-dense (bq, C) slab with one relayout
    y = jnp.transpose(yh_s[...], (1, 0, 2)).reshape(bq, C)

    y = jnp.dot(y.astype(bf16), w_proj_ref[...],
                preferred_element_type=f32) + b_proj_ref[...]
    x = x + y                                                  # residual 1

    h2 = _layernorm(x, ln2_g_ref[...], ln2_b_ref[...])
    hfc = jnp.dot(h2.astype(bf16), w_fc_ref[...],
                  preferred_element_type=f32) + b_fc_ref[...]  # (bq, 4C)
    hfc = _gelu_tanh(hfc)
    m = jnp.dot(hfc.astype(bf16), w_mproj_ref[...],
                preferred_element_type=f32) + b_mproj_ref[...]
    o_ref[0] = (x + m).astype(o_ref.dtype)                     # residual 2


# ---------------------------------------------------------------------------
# wrapper plumbing
# ---------------------------------------------------------------------------
def _pick_block_q(T: int, target: int = 256) -> int:
    """Largest divisor of T that is <= target and a multiple of 8 (else T)."""
    if T <= target:
        return T
    for cand in range(target, 7, -8):
        if T % cand == 0:
            return cand
    return T


def _vmem_limit_bytes() -> int:
    """~75% of physical VMEM (generation-aware: 96 MiB on v5e/v6e, 48 on v7x)."""
    try:
        cap = int(pltpu.get_tpu_info().vmem_capacity_bytes)
    except Exception:
        # introspection unavailable on this build: size for the smallest part
        cap = 64 * 1024 * 1024
    return int(0.75 * cap)


@functools.lru_cache(maxsize=None)
def _single_buffered_weights_supported() -> bool:
    """One-time cached probe: does this build accept pipeline_mode=pl.Buffered(1)?"""
    def _probe(x_ref, o_ref):
        o_ref[...] = x_ref[...] + 1.0
    try:
        x = jnp.zeros((8, 128), jnp.float32)
        out = pl.pallas_call(
            _probe,
            out_shape=jax.ShapeDtypeStruct((8, 128), jnp.float32),
            grid=(1,),
            in_specs=[pl.BlockSpec((8, 128), lambda i: (0, 0),
                                   pipeline_mode=pl.Buffered(1))],
            out_specs=pl.BlockSpec((8, 128), lambda i: (0, 0)),
        )(x)
        jax.block_until_ready(out)
        return True
    except Exception:
        return False


def _invariant_spec(shape, single_buffer: bool) -> pl.BlockSpec:
    """BlockSpec for grid-invariant operands (weights/biases)."""
    nd = len(shape)
    imap = lambda b, i, _nd=nd: (0,) * _nd
    if single_buffer:
        return pl.BlockSpec(shape, imap, pipeline_mode=pl.Buffered(1))
    return pl.BlockSpec(shape, imap)


@functools.partial(jax.jit,
                   static_argnames=("n_head", "single_buffer", "vmem_limit"))
def _block_forward_impl(x, params, *, n_head, single_buffer, vmem_limit):
    B, T, C = x.shape
    assert C % n_head == 0
    hd = C // n_head
    bq = _pick_block_q(T)
    nq = T // bq
    winv = functools.partial(_invariant_spec, single_buffer=single_buffer)
    cparams = pltpu.CompilerParams(
        dimension_semantics=("parallel", "parallel"),
        vmem_limit_bytes=vmem_limit,
    )
    bf16 = jnp.bfloat16

    # ---------------- stage 1: q (pre-scaled), k, v ----------------
    q, k, v = pl.pallas_call(
        functools.partial(qkv_kernel, n_head=n_head),
        out_shape=(jax.ShapeDtypeStruct((B, T, C), bf16),
                   jax.ShapeDtypeStruct((B, T, C), bf16),
                   jax.ShapeDtypeStruct((B, T, C), bf16)),
        grid_spec=pltpu.PrefetchScalarGridSpec(
            num_scalar_prefetch=0,
            grid=(B, nq),
            in_specs=[
                pl.BlockSpec((1, bq, C), lambda b, i: (b, i, 0)),   # x
                winv((1, C)), winv((1, C)),                         # ln1 g/b
                winv((C, 3 * C)), winv((1, 3 * C)),                 # c_attn
            ],
            out_specs=(pl.BlockSpec((1, bq, C), lambda b, i: (b, i, 0)),
                       pl.BlockSpec((1, bq, C), lambda b, i: (b, i, 0)),
                       pl.BlockSpec((1, bq, C), lambda b, i: (b, i, 0))),
        ),
        compiler_params=cparams,
    )(x, params["ln1_g"], params["ln1_b"], params["w_attn"], params["b_attn"])

    # -------- stage 2: attention + proj + residual + LN2 + MLP ------
    out = pl.pallas_call(
        functools.partial(attn_mlp_kernel, n_head=n_head),
        out_shape=jax.ShapeDtypeStruct((B, T, C), x.dtype),
        grid_spec=pltpu.PrefetchScalarGridSpec(
            num_scalar_prefetch=0,
            grid=(B, nq),
            in_specs=[
                pl.BlockSpec((1, bq, C), lambda b, i: (b, i, 0)),   # x (residual)
                pl.BlockSpec((1, bq, C), lambda b, i: (b, i, 0)),   # q tile
                pl.BlockSpec((1, T, C), lambda b, i: (b, 0, 0)),    # k full seq
                pl.BlockSpec((1, T, C), lambda b, i: (b, 0, 0)),    # v full seq
                winv((C, C)), winv((1, C)),                         # c_proj (attn)
                winv((1, C)), winv((1, C)),                         # ln2 g/b
                winv((C, 4 * C)), winv((1, 4 * C)),                 # c_fc
                winv((4 * C, C)), winv((1, C)),                     # c_proj (mlp)
            ],
            out_specs=pl.BlockSpec((1, bq, C), lambda b, i: (b, i, 0)),
            scratch_shapes=[
                pltpu.VMEM((n_head, bq, hd), bf16),        # q heads
                pltpu.VMEM((n_head, T, hd), bf16),         # k heads
                pltpu.VMEM((n_head, T, hd), bf16),         # v heads
                pltpu.VMEM((n_head, bq, hd), jnp.float32), # per-head outputs
            ],
        ),
        compiler_params=cparams,
    )(x, q, k, v,
      params["w_proj"], params["b_proj"],
      params["ln2_g"], params["ln2_b"],
      params["w_fc"], params["b_fc"],
      params["w_mproj"], params["b_mproj"])
    return out


def block_forward(x, params, n_head):
    # capability probe / hw query done once, eagerly, outside jit
    single_buffer = _single_buffered_weights_supported()
    vmem_limit = _vmem_limit_bytes()
    return _block_forward_impl(x, params, n_head=n_head,
                               single_buffer=single_buffer,
                               vmem_limit=vmem_limit)


# ---------------------------------------------------------------------------
# params + pure-JAX reference (PyTorch-equivalent forward, f32)
# ---------------------------------------------------------------------------
def init_params(key, n_embd):
    C = n_embd
    ks = jax.random.split(key, 6)
    s = 0.02
    f32, bf16 = jnp.float32, jnp.bfloat16
    return {
        "ln1_g": jnp.ones((1, C), f32),
        "ln1_b": jnp.zeros((1, C), f32),
        # stored as (in, out) so the kernel does x @ W + b (== PyTorch x @ W.T + b)
        "w_attn": (s * jax.random.normal(ks[0], (C, 3 * C), f32)).astype(bf16),
        "b_attn": s * jax.random.normal(ks[1], (1, 3 * C), f32),
        "w_proj": (s * jax.random.normal(ks[2], (C, C), f32)).astype(bf16),
        "b_proj": s * jax.random.normal(ks[3], (1, C), f32),
        "ln2_g": jnp.ones((1, C), f32),
        "ln2_b": jnp.zeros((1, C), f32),
        "w_fc": (s * jax.random.normal(ks[4], (C, 4 * C), f32)).astype(bf16),
        "b_fc": jnp.zeros((1, 4 * C), f32),
        "w_mproj": (s * jax.random.normal(ks[5], (4 * C, C), f32)).astype(bf16),
        "b_mproj": jnp.zeros((1, C), f32),
    }


def block_ref(x, params, n_head):
    """Pure-JAX f32 reference matching the PyTorch Block forward."""
    f32 = jnp.float32
    B, T, C = x.shape
    hd = C // n_head
    w_attn = params["w_attn"].astype(f32)
    w_proj = params["w_proj"].astype(f32)
    w_fc = params["w_fc"].astype(f32)
    w_mproj = params["w_mproj"].astype(f32)

    h1 = _layernorm(x, params["ln1_g"], params["ln1_b"])
    qkv = h1 @ w_attn + params["b_attn"]
    q, k, v = jnp.split(qkv, 3, axis=-1)
    q = q.reshape(B, T, n_head, hd).transpose(0, 2, 1, 3)
    k = k.reshape(B, T, n_head, hd).transpose(0, 2, 1, 3)
    v = v.reshape(B, T, n_head, hd).transpose(0, 2, 1, 3)
    att = (q @ jnp.swapaxes(k, -1, -2)) * (1.0 / math.sqrt(hd))
    causal = jnp.tril(jnp.ones((T, T), bool))
    att = jnp.where(causal[None, None], att, -jnp.inf)
    att = jax.nn.softmax(att, axis=-1)
    y = (att @ v).transpose(0, 2, 1, 3).reshape(B, T, C)
    y = y @ w_proj + params["b_proj"]
    x = x + y

    h2 = _layernorm(x, params["ln2_g"], params["ln2_b"])
    m = _gelu_tanh(h2 @ w_fc + params["b_fc"]) @ w_mproj + params["b_mproj"]
    return x + m


# ---------------------------------------------------------------------------
if __name__ == "__main__":
    B, T, C, n_head = 2, 8, 32, 4   # block_size >= T assumed; head_dim = 8

    key = jax.random.PRNGKey(0)
    kx, kp = jax.random.split(key)
    x = jax.random.normal(kx, (B, T, C), jnp.float32)
    params = init_params(kp, C)

    out = block_forward(x, params, n_head)
    out = jax.block_until_ready(out)

    assert out.shape == (B, T, C)
    ref = block_ref(x, params, n_head)
    # bf16 MXU inputs + (Newton-refined) approx reciprocal vs f32 reference
    assert bool(jnp.allclose(out, ref, atol=5e-2, rtol=0.0)), "mismatch vs reference"
    print("KERNEL_OK")
</pallas_src>

<mosaic_0001>
module attributes {stable_mosaic.version = 11 : i64} {
  func.func @_probe(%arg0: i32, %arg1: memref<8x128xf32, #tpu.memory_space<vmem>>, %arg2: memref<8x128xf32, #tpu.memory_space<vmem>>) attributes {dimension_semantics = [#tpu.dimension_semantics<arbitrary>], iteration_bounds = array<i64: 1>, scalar_prefetch = 0 : i64, scratch_operands = 0 : i64, tpu.core_type = #tpu.core_type<tc>, window_params = [{pipeline_mode = #tpu.pipeline_mode<synchronous>, transform_indices = @transform_0, window_bounds = array<i64: 8, 128>}, {pipeline_mode = #tpu.pipeline_mode<synchronous>, transform_indices = @transform_1, window_bounds = array<i64: 8, 128>}]} {
    %c0 = arith.constant 0 : index
    %c0_0 = arith.constant 0 : index
    %0 = vector.load %arg1[%c0, %c0_0] : memref<8x128xf32, #tpu.memory_space<vmem>>, vector<8x128xf32>
    %cst = arith.constant 1.000000e+00 : f32
    %1 = vector.broadcast %cst : f32 to vector<8x128xf32>
    %2 = arith.addf %0, %1 : vector<8x128xf32>
    %c0_1 = arith.constant 0 : index
    %c0_2 = arith.constant 0 : index
    %3 = vector.load %arg2[%c0_1, %c0_2] : memref<8x128xf32, #tpu.memory_space<vmem>>, vector<8x128xf32>
    tpu.vector_store %arg2[%c0_1, %c0_2], %2 {strides = array<i32>} : memref<8x128xf32, #tpu.memory_space<vmem>>, vector<8x128xf32>,
    return
  }
  func.func @transform_0(%arg0: i32) -> (i32, i32) {
    %c0_i32 = arith.constant 0 : i32
    %c0_i32_0 = arith.constant 0 : i32
    %c0_i32_1 = arith.constant 0 : i32
    return %c0_i32, %c0_i32_0 : i32, i32
  }
  func.func @transform_1(%arg0: i32) -> (i32, i32) {
    %c0_i32 = arith.constant 0 : i32
    %c0_i32_0 = arith.constant 0 : i32
    %c0_i32_1 = arith.constant 0 : i32
    return %c0_i32, %c0_i32_0 : i32, i32
  }
}

module attributes {stable_mosaic.version = 11 : i64} {
  func.func @attn_mlp_kernel(%arg0: i32, %arg1: i32, %arg2: memref<1x8x32xf32, #tpu.memory_space<vmem>>, %arg3: memref<1x8x32xbf16, #tpu.memory_space<vmem>>, %arg4: memref<1x8x32xbf16, #tpu.memory_space<vmem>>, %arg5: memref<1x8x32xbf16, #tpu.memory_space<vmem>>, %arg6: memref<32x32xbf16, #tpu.memory_space<vmem>>, %arg7: memref<1x32xf32, #tpu.memory_space<vmem>>, %arg8: memref<1x32xf32, #tpu.memory_space<vmem>>, %arg9: memref<1x32xf32, #tpu.memory_space<vmem>>, %arg10: memref<32x128xbf16, #tpu.memory_space<vmem>>, %arg11: memref<1x128xf32, #tpu.memory_space<vmem>>, %arg12: memref<128x32xbf16, #tpu.memory_space<vmem>>, %arg13: memref<1x32xf32, #tpu.memory_space<vmem>>, %arg14: memref<1x8x32xf32, #tpu.memory_space<vmem>>, %arg15: memref<4x8x8xbf16, #tpu.memory_space<vmem>>, %arg16: memref<4x8x8xbf16, #tpu.memory_space<vmem>>, %arg17: memref<4x8x8xbf16, #tpu.memory_space<vmem>>, %arg18: memref<4x8x8xf32, #tpu.memory_space<vmem>>) attributes {dimension_semantics = [#tpu.dimension_semantics<parallel>, #tpu.dimension_semantics<parallel>], iteration_bounds = array<i64: 2, 1>, scalar_prefetch = 0 : i64, scratch_operands = 4 : i64, tpu.core_type = #tpu.core_type<tc>, window_params = [{transform_indices = @transform_0, window_bounds = array<i64: 1, 8, 32>}, {transform_indices = @transform_1, window_bounds = array<i64: 1, 8, 32>}, {transform_indices = @transform_2, window_bounds = array<i64: 1, 8, 32>}, {transform_indices = @transform_3, window_bounds = array<i64: 1, 8, 32>}, {pipeline_mode = #tpu.pipeline_mode<synchronous>, transform_indices = @transform_4, window_bounds = array<i64: 32, 32>}, {pipeline_mode = #tpu.pipeline_mode<synchronous>, transform_indices = @transform_5, window_bounds = array<i64: 1, 32>}, {pipeline_mode = #tpu.pipeline_mode<synchronous>, transform_indices = @transform_6, window_bounds = array<i64: 1, 32>}, {pipeline_mode = #tpu.pipeline_mode<synchronous>, transform_indices = @transform_7, window_bounds = array<i64: 1, 32>}, {pipeline_mode = #tpu.pipeline_mode<synchronous>, transform_indices = @transform_8, window_bounds = array<i64: 32, 128>}, {pipeline_mode = #tpu.pipeline_mode<synchronous>, transform_indices = @transform_9, window_bounds = array<i64: 1, 128>}, {pipeline_mode = #tpu.pipeline_mode<synchronous>, transform_indices = @transform_10, window_bounds = array<i64: 128, 32>}, {pipeline_mode = #tpu.pipeline_mode<synchronous>, transform_indices = @transform_11, window_bounds = array<i64: 1, 32>}, {transform_indices = @transform_12, window_bounds = array<i64: 1, 8, 32>}]} {
    %c0 = arith.constant 0 : index
    %c0_0 = arith.constant 0 : index
    %c0_1 = arith.constant 0 : index
    %0 = vector.load %arg2[%c0, %c0_0, %c0_1] : memref<1x8x32xf32, #tpu.memory_space<vmem>>, vector<1x8x32xf32>
    %1 = vector.shape_cast %0 : vector<1x8x32xf32> to vector<8x32xf32>
    %c0_2 = arith.constant 0 : index
    %c0_3 = arith.constant 0 : index
    %c0_4 = arith.constant 0 : index
    %2 = vector.load %arg3[%c0_2, %c0_3, %c0_4] : memref<1x8x32xbf16, #tpu.memory_space<vmem>>, vector<1x8x32xbf16>
    %3 = vector.shape_cast %2 : vector<1x8x32xbf16> to vector<8x32xbf16>
    %4 = vector.shape_cast %3 : vector<8x32xbf16> to vector<8x4x8xbf16>
    %5 = tpu.transpose %4, [1, 0, 2] : vector<8x4x8xbf16> -> vector<4x8x8xbf16>
    %c0_5 = arith.constant 0 : index
    %c0_6 = arith.constant 0 : index
    %c0_7 = arith.constant 0 : index
    %6 = vector.load %arg15[%c0_5, %c0_6, %c0_7] : memref<4x8x8xbf16, #tpu.memory_space<vmem>>, vector<4x8x8xbf16>
    tpu.vector_store %arg15[%c0_5, %c0_6, %c0_7], %5 {strides = array<i32>} : memref<4x8x8xbf16, #tpu.memory_space<vmem>>, vector<4x8x8xbf16>,
    %c0_8 = arith.constant 0 : index
    %c0_9 = arith.constant 0 : index
    %c0_10 = arith.constant 0 : index
    %7 = vector.load %arg4[%c0_8, %c0_9, %c0_10] : memref<1x8x32xbf16, #tpu.memory_space<vmem>>, vector<1x8x32xbf16>
    %8 = vector.shape_cast %7 : vector<1x8x32xbf16> to vector<8x32xbf16>
    %9 = vector.shape_cast %8 : vector<8x32xbf16> to vector<8x4x8xbf16>
    %10 = tpu.transpose %9, [1, 0, 2] : vector<8x4x8xbf16> -> vector<4x8x8xbf16>
    %c0_11 = arith.constant 0 : index
    %c0_12 = arith.constant 0 : index
    %c0_13 = arith.constant 0 : index
    %11 = vector.load %arg16[%c0_11, %c0_12, %c0_13] : memref<4x8x8xbf16, #tpu.memory_space<vmem>>, vector<4x8x8xbf16>
    tpu.vector_store %arg16[%c0_11, %c0_12, %c0_13], %10 {strides = array<i32>} : memref<4x8x8xbf16, #tpu.memory_space<vmem>>, vector<4x8x8xbf16>,
    %c0_14 = arith.constant 0 : index
    %c0_15 = arith.constant 0 : index
    %c0_16 = arith.constant 0 : index
    %12 = vector.load %arg5[%c0_14, %c0_15, %c0_16] : memref<1x8x32xbf16, #tpu.memory_space<vmem>>, vector<1x8x32xbf16>
    %13 = vector.shape_cast %12 : vector<1x8x32xbf16> to vector<8x32xbf16>
    %14 = vector.shape_cast %13 : vector<8x32xbf16> to vector<8x4x8xbf16>
    %15 = tpu.transpose %14, [1, 0, 2] : vector<8x4x8xbf16> -> vector<4x8x8xbf16>
    %c0_17 = arith.constant 0 : index
    %c0_18 = arith.constant 0 : index
    %c0_19 = arith.constant 0 : index
    %16 = vector.load %arg17[%c0_17, %c0_18, %c0_19] : memref<4x8x8xbf16, #tpu.memory_space<vmem>>, vector<4x8x8xbf16>
    tpu.vector_store %arg17[%c0_17, %c0_18, %c0_19], %15 {strides = array<i32>} : memref<4x8x8xbf16, #tpu.memory_space<vmem>>, vector<4x8x8xbf16>,
    %c8_i32 = arith.constant 8 : i32
    %17 = arith.muli %arg1, %c8_i32 : i32
    %18 = tpu.iota {dimensions = array<i32: 0>} : vector<8x8xi32>
    %19 = vector.broadcast %17 : i32 to vector<8x8xi32>
    %20 = arith.addi %19, %18 : vector<8x8xi32>
    %21 = tpu.iota {dimensions = array<i32: 1>} : vector<8x8xi32>
    %22 = arith.cmpi sle, %21, %20 : vector<8x8xi32>
    %cst = arith.constant 0.000000e+00 : f32
    %cst_20 = arith.constant -1.000000e+30 : f32
    %23 = vector.broadcast %cst : f32 to vector<8x8xf32>
    %24 = vector.broadcast %cst_20 : f32 to vector<8x8xf32>
    %25 = arith.select %22, %23, %24 : vector<8x8xi1>, vector<8x8xf32>
    %c0_i32 = arith.constant 0 : i32
    %c4_i32 = arith.constant 4 : i32
    %26 = arith.addi %c0_i32, %c4_i32 : i32
    %c1_i32 = arith.constant 1 : i32
    scf.for %arg19 = %c0_i32 to %26 step %c1_i32  : i32 {
      %c1_i32_56 = arith.constant 1 : i32
      %90 = arith.muli %arg19, %c1_i32_56 : i32
      %c0_i32_57 = arith.constant 0 : i32
      %91 = arith.addi %c0_i32_57, %90 : i32
      %92 = arith.index_cast %91 : i32 to index
      %c0_58 = arith.constant 0 : index
      %c0_59 = arith.constant 0 : index
      %93 = vector.load %arg15[%92, %c0_58, %c0_59] : memref<4x8x8xbf16, #tpu.memory_space<vmem>>, vector<1x8x8xbf16>
      %94 = vector.shape_cast %93 : vector<1x8x8xbf16> to vector<8x8xbf16>
      %95 = arith.index_cast %91 : i32 to index
      %c0_60 = arith.constant 0 : index
      %c0_61 = arith.constant 0 : index
      %96 = vector.load %arg16[%95, %c0_60, %c0_61] : memref<4x8x8xbf16, #tpu.memory_space<vmem>>, vector<1x8x8xbf16>
      %97 = vector.shape_cast %96 : vector<1x8x8xbf16> to vector<8x8xbf16>
      %cst_62 = arith.constant dense<0.000000e+00> : vector<8x8xf32>
      %98 = tpu.matmul %94, %97, %cst_62 {dimension_numbers = #tpu.dot_dimension_numbers<[1], [1], [0], [0], [0, 0, 1, 0], [], []>} : vector<8x8xbf16>, vector<8x8xbf16>, vector<8x8xf32> -> vector<8x8xf32>
      %99 = arith.addf %98, %25 : vector<8x8xf32>
      %cst_63 = arith.constant dense<0xFF800000> : vector<8xf32>
      %100 = vector.multi_reduction <maximumf>, %99, %cst_63 [1] : vector<8x8xf32> to vector<8xf32>
      %101 = vector.shape_cast %100 : vector<8xf32> to vector<8x1xf32>
      %102 = vector.broadcast %101 : vector<8x1xf32> to vector<8x8xf32>
      %103 = arith.subf %99, %102 : vector<8x8xf32>
      %104 = math.exp %103 : vector<8x8xf32>
      %cst_64 = arith.constant dense<0.000000e+00> : vector<8xf32>
      %105 = vector.multi_reduction <add>, %104, %cst_64 [1] : vector<8x8xf32> to vector<8xf32>
      %106 = vector.shape_cast %105 : vector<8xf32> to vector<8x1xf32>
      %107 = tpu.reciprocal %106 {approx = true} : vector<8x1xf32> -> vector<8x1xf32>
      %108 = arith.mulf %106, %107 : vector<8x1xf32>
      %cst_65 = arith.constant 2.000000e+00 : f32
      %109 = vector.broadcast %cst_65 : f32 to vector<8x1xf32>
      %110 = arith.subf %109, %108 : vector<8x1xf32>
      %111 = arith.mulf %107, %110 : vector<8x1xf32>
      %112 = vector.broadcast %111 : vector<8x1xf32> to vector<8x8xf32>
      %113 = arith.mulf %104, %112 : vector<8x8xf32>
      %114 = arith.truncf %113 : vector<8x8xf32> to vector<8x8xbf16>
      %115 = arith.index_cast %91 : i32 to index
      %c0_66 = arith.constant 0 : index
      %c0_67 = arith.constant 0 : index
      %116 = vector.load %arg17[%115, %c0_66, %c0_67] : memref<4x8x8xbf16, #tpu.memory_space<vmem>>, vector<1x8x8xbf16>
      %117 = vector.shape_cast %116 : vector<1x8x8xbf16> to vector<8x8xbf16>
      %cst_68 = arith.constant dense<0.000000e+00> : vector<8x8xf32>
      %118 = tpu.matmul %114, %117, %cst_68 {dimension_numbers = #tpu.dot_dimension_numbers<[1], [0], [0], [1], [0, 0, 1, 1], [], []>} : vector<8x8xbf16>, vector<8x8xbf16>, vector<8x8xf32> -> vector<8x8xf32>
      %119 = arith.index_cast %91 : i32 to index
      %c0_69 = arith.constant 0 : index
      %c0_70 = arith.constant 0 : index
      %120 = vector.load %arg18[%119, %c0_69, %c0_70] : memref<4x8x8xf32, #tpu.memory_space<vmem>>, vector<1x8x8xf32>
      %121 = vector.shape_cast %120 : vector<1x8x8xf32> to vector<8x8xf32>
      %122 = vector.shape_cast %118 : vector<8x8xf32> to vector<1x8x8xf32>
      tpu.vector_store %arg18[%119, %c0_69, %c0_70], %122 {strides = array<i32>} : memref<4x8x8xf32, #tpu.memory_space<vmem>>, vector<1x8x8xf32>,
    }
    %c4_i32_21 = arith.constant 4 : i32
    %c0_22 = arith.constant 0 : index
    %c0_23 = arith.constant 0 : index
    %c0_24 = arith.constant 0 : index
    %27 = vector.load %arg18[%c0_22, %c0_23, %c0_24] : memref<4x8x8xf32, #tpu.memory_space<vmem>>, vector<4x8x8xf32>
    %28 = tpu.transpose %27, [1, 0, 2] : vector<4x8x8xf32> -> vector<8x4x8xf32>
    %29 = vector.shape_cast %28 : vector<8x4x8xf32> to vector<8x32xf32>
    %30 = arith.truncf %29 : vector<8x32xf32> to vector<8x32xbf16>
    %c0_25 = arith.constant 0 : index
    %c0_26 = arith.constant 0 : index
    %31 = vector.load %arg6[%c0_25, %c0_26] : memref<32x32xbf16, #tpu.memory_space<vmem>>, vector<32x32xbf16>
    %cst_27 = arith.constant dense<0.000000e+00> : vector<8x32xf32>
    %32 = tpu.matmul %30, %31, %cst_27 {dimension_numbers = #tpu.dot_dimension_numbers<[1], [0], [0], [1], [0, 0, 1, 1], [], []>} : vector<8x32xbf16>, vector<32x32xbf16>, vector<8x32xf32> -> vector<8x32xf32>
    %c0_28 = arith.constant 0 : index
    %c0_29 = arith.constant 0 : index
    %33 = vector.load %arg7[%c0_28, %c0_29] : memref<1x32xf32, #tpu.memory_space<vmem>>, vector<1x32xf32>
    %34 = vector.broadcast %33 : vector<1x32xf32> to vector<8x32xf32>
    %35 = arith.addf %32, %34 : vector<8x32xf32>
    %36 = arith.addf %1, %35 : vector<8x32xf32>
    %c0_30 = arith.constant 0 : index
    %c0_31 = arith.constant 0 : index
    %37 = vector.load %arg8[%c0_30, %c0_31] : memref<1x32xf32, #tpu.memory_space<vmem>>, vector<1x32xf32>
    %c0_32 = arith.constant 0 : index
    %c0_33 = arith.constant 0 : index
    %38 = vector.load %arg9[%c0_32, %c0_33] : memref<1x32xf32, #tpu.memory_space<vmem>>, vector<1x32xf32>
    %cst_34 = arith.constant dense<0.000000e+00> : vector<8xf32>
    %39 = vector.multi_reduction <add>, %36, %cst_34 [1] : vector<8x32xf32> to vector<8xf32>
    %40 = vector.shape_cast %39 : vector<8xf32> to vector<8x1xf32>
    %cst_35 = arith.constant 3.200000e+01 : f32
    %41 = vector.broadcast %cst_35 : f32 to vector<8x1xf32>
    %42 = arith.divf %40, %41 : vector<8x1xf32>
    %43 = vector.broadcast %42 : vector<8x1xf32> to vector<8x32xf32>
    %44 = arith.subf %36, %43 : vector<8x32xf32>
    %45 = arith.mulf %44, %44 : vector<8x32xf32>
    %cst_36 = arith.constant dense<0.000000e+00> : vector<8xf32>
    %46 = vector.multi_reduction <add>, %45, %cst_36 [1] : vector<8x32xf32> to vector<8xf32>
    %47 = vector.shape_cast %46 : vector<8xf32> to vector<8x1xf32>
    %cst_37 = arith.constant 3.200000e+01 : f32
    %48 = vector.broadcast %cst_37 : f32 to vector<8x1xf32>
    %49 = arith.divf %47, %48 : vector<8x1xf32>
    %50 = vector.broadcast %42 : vector<8x1xf32> to vector<8x32xf32>
    %51 = arith.subf %36, %50 : vector<8x32xf32>
    %cst_38 = arith.constant 9.99999974E-6 : f32
    %52 = vector.broadcast %cst_38 : f32 to vector<8x1xf32>
    %53 = arith.addf %49, %52 : vector<8x1xf32>
    %54 = math.rsqrt %53 : vector<8x1xf32>
    %55 = vector.broadcast %54 : vector<8x1xf32> to vector<8x32xf32>
    %56 = arith.mulf %51, %55 : vector<8x32xf32>
    %57 = vector.broadcast %37 : vector<1x32xf32> to vector<8x32xf32>
    %58 = arith.mulf %56, %57 : vector<8x32xf32>
    %59 = vector.broadcast %38 : vector<1x32xf32> to vector<8x32xf32>
    %60 = arith.addf %58, %59 : vector<8x32xf32>
    %61 = arith.truncf %60 : vector<8x32xf32> to vector<8x32xbf16>
    %c0_39 = arith.constant 0 : index
    %c0_40 = arith.constant 0 : index
    %62 = vector.load %arg10[%c0_39, %c0_40] : memref<32x128xbf16, #tpu.memory_space<vmem>>, vector<32x128xbf16>
    %cst_41 = arith.constant dense<0.000000e+00> : vector<8x128xf32>
    %63 = tpu.matmul %61, %62, %cst_41 {dimension_numbers = #tpu.dot_dimension_numbers<[1], [0], [0], [1], [0, 0, 1, 1], [], []>} : vector<8x32xbf16>, vector<32x128xbf16>, vector<8x128xf32> -> vector<8x128xf32>
    %c0_42 = arith.constant 0 : index
    %c0_43 = arith.constant 0 : index
    %64 = vector.load %arg11[%c0_42, %c0_43] : memref<1x128xf32, #tpu.memory_space<vmem>>, vector<1x128xf32>
    %65 = vector.broadcast %64 : vector<1x128xf32> to vector<8x128xf32>
    %66 = arith.addf %63, %65 : vector<8x128xf32>
    %cst_44 = arith.constant 5.000000e-01 : f32
    %67 = vector.broadcast %cst_44 : f32 to vector<8x128xf32>
    %68 = arith.mulf %67, %66 : vector<8x128xf32>
    %cst_45 = arith.constant 4.471500e-02 : f32
    %69 = vector.broadcast %cst_45 : f32 to vector<8x128xf32>
    %70 = arith.mulf %69, %66 : vector<8x128xf32>
    %71 = arith.mulf %70, %66 : vector<8x128xf32>
    %72 = arith.mulf %71, %66 : vector<8x128xf32>
    %73 = arith.addf %66, %72 : vector<8x128xf32>
    %cst_46 = arith.constant 0.797884583 : f32
    %74 = vector.broadcast %cst_46 : f32 to vector<8x128xf32>
    %75 = arith.mulf %74, %73 : vector<8x128xf32>
    %76 = math.tanh %75 : vector<8x128xf32>
    %cst_47 = arith.constant 1.000000e+00 : f32
    %77 = vector.broadcast %cst_47 : f32 to vector<8x128xf32>
    %78 = arith.addf %77, %76 : vector<8x128xf32>
    %79 = arith.mulf %68, %78 : vector<8x128xf32>
    %80 = arith.truncf %79 : vector<8x128xf32> to vector<8x128xbf16>
    %c0_48 = arith.constant 0 : index
    %c0_49 = arith.constant 0 : index
    %81 = vector.load %arg12[%c0_48, %c0_49] : memref<128x32xbf16, #tpu.memory_space<vmem>>, vector<128x32xbf16>
    %cst_50 = arith.constant dense<0.000000e+00> : vector<8x32xf32>
    %82 = tpu.matmul %80, %81, %cst_50 {dimension_numbers = #tpu.dot_dimension_numbers<[1], [0], [0], [1], [0, 0, 1, 1], [], []>} : vector<8x128xbf16>, vector<128x32xbf16>, vector<8x32xf32> -> vector<8x32xf32>
    %c0_51 = arith.constant 0 : index
    %c0_52 = arith.constant 0 : index
    %83 = vector.load %arg13[%c0_51, %c0_52] : memref<1x32xf32, #tpu.memory_space<vmem>>, vector<1x32xf32>
    %84 = vector.broadcast %83 : vector<1x32xf32> to vector<8x32xf32>
    %85 = arith.addf %82, %84 : vector<8x32xf32>
    %86 = arith.addf %36, %85 : vector<8x32xf32>
    %c0_53 = arith.constant 0 : index
    %c0_54 = arith.constant 0 : index
    %c0_55 = arith.constant 0 : index
    %87 = vector.load %arg14[%c0_53, %c0_54, %c0_55] : memref<1x8x32xf32, #tpu.memory_space<vmem>>, vector<1x8x32xf32>
    %88 = vector.shape_cast %87 : vector<1x8x32xf32> to vector<8x32xf32>
    %89 = vector.shape_cast %86 : vector<8x32xf32> to vector<1x8x32xf32>
    tpu.vector_store %arg14[%c0_53, %c0_54, %c0_55], %89 {strides = array<i32>} : memref<1x8x32xf32, #tpu.memory_space<vmem>>, vector<1x8x32xf32>,
    return
  }
  func.func @transform_0(%arg0: i32, %arg1: i32) -> (i32, i32, i32) {
    %c0_i32 = arith.constant 0 : i32
    %c0_i32_0 = arith.constant 0 : i32
    return %arg0, %arg1, %c0_i32 : i32, i32, i32
  }
  func.func @transform_1(%arg0: i32, %arg1: i32) -> (i32, i32, i32) {
    %c0_i32 = arith.constant 0 : i32
    %c0_i32_0 = arith.constant 0 : i32
    return %arg0, %arg1, %c0_i32 : i32, i32, i32
  }
  func.func @transform_2(%arg0: i32, %arg1: i32) -> (i32, i32, i32) {
    %c0_i32 = arith.constant 0 : i32
    %c0_i32_0 = arith.constant 0 : i32
    %c0_i32_1 = arith.constant 0 : i32
    return %arg0, %c0_i32, %c0_i32_0 : i32, i32, i32
  }
  func.func @transform_3(%arg0: i32, %arg1: i32) -> (i32, i32, i32) {
    %c0_i32 = arith.constant 0 : i32
    %c0_i32_0 = arith.constant 0 : i32
    %c0_i32_1 = arith.constant 0 : i32
    return %arg0, %c0_i32, %c0_i32_0 : i32, i32, i32
  }
  func.func @transform_4(%arg0: i32, %arg1: i32) -> (i32, i32) {
    %c0_i32 = arith.constant 0 : i32
    %c0_i32_0 = arith.constant 0 : i32
    %c0_i32_1 = arith.constant 0 : i32
    return %c0_i32, %c0_i32_0 : i32, i32
  }
  func.func @transform_5(%arg0: i32, %arg1: i32) -> (i32, i32) {
    %c0_i32 = arith.constant 0 : i32
    %c0_i32_0 = arith.constant 0 : i32
    %c0_i32_1 = arith.constant 0 : i32
    return %c0_i32, %c0_i32_0 : i32, i32
  }
  func.func @transform_6(%arg0: i32, %arg1: i32) -> (i32, i32) {
    %c0_i32 = arith.constant 0 : i32
    %c0_i32_0 = arith.constant 0 : i32
    %c0_i32_1 = arith.constant 0 : i32
    return %c0_i32, %c0_i32_0 : i32, i32
  }
  func.func @transform_7(%arg0: i32, %arg1: i32) -> (i32, i32) {
    %c0_i32 = arith.constant 0 : i32
    %c0_i32_0 = arith.constant 0 : i32
    %c0_i32_1 = arith.constant 0 : i32
    return %c0_i32, %c0_i32_0 : i32, i32
  }
  func.func @transform_8(%arg0: i32, %arg1: i32) -> (i32, i32) {
    %c0_i32 = arith.constant 0 : i32
    %c0_i32_0 = arith.constant 0 : i32
    %c0_i32_1 = arith.constant 0 : i32
    return %c0_i32, %c0_i32_0 : i32, i32
  }
  func.func @transform_9(%arg0: i32, %arg1: i32) -> (i32, i32) {
    %c0_i32 = arith.constant 0 : i32
    %c0_i32_0 = arith.constant 0 : i32
    %c0_i32_1 = arith.constant 0 : i32
    return %c0_i32, %c0_i32_0 : i32, i32
  }
  func.func @transform_10(%arg0: i32, %arg1: i32) -> (i32, i32) {
    %c0_i32 = arith.constant 0 : i32
    %c0_i32_0 = arith.constant 0 : i32
    %c0_i32_1 = arith.constant 0 : i32
    return %c0_i32, %c0_i32_0 : i32, i32
  }
  func.func @transform_11(%arg0: i32, %arg1: i32) -> (i32, i32) {
    %c0_i32 = arith.constant 0 : i32
    %c0_i32_0 = arith.constant 0 : i32
    %c0_i32_1 = arith.constant 0 : i32
    return %c0_i32, %c0_i32_0 : i32, i32
  }
  func.func @transform_12(%arg0: i32, %arg1: i32) -> (i32, i32, i32) {
    %c0_i32 = arith.constant 0 : i32
    %c0_i32_0 = arith.constant 0 : i32
    return %arg0, %arg1, %c0_i32 : i32, i32, i32
  }
}

module attributes {stable_mosaic.version = 11 : i64} {
  func.func @qkv_kernel(%arg0: i32, %arg1: i32, %arg2: memref<1x8x32xf32, #tpu.memory_space<vmem>>, %arg3: memref<1x32xf32, #tpu.memory_space<vmem>>, %arg4: memref<1x32xf32, #tpu.memory_space<vmem>>, %arg5: memref<32x96xbf16, #tpu.memory_space<vmem>>, %arg6: memref<1x96xf32, #tpu.memory_space<vmem>>, %arg7: memref<1x8x32xbf16, #tpu.memory_space<vmem>>, %arg8: memref<1x8x32xbf16, #tpu.memory_space<vmem>>, %arg9: memref<1x8x32xbf16, #tpu.memory_space<vmem>>) attributes {dimension_semantics = [#tpu.dimension_semantics<parallel>, #tpu.dimension_semantics<parallel>], iteration_bounds = array<i64: 2, 1>, scalar_prefetch = 0 : i64, scratch_operands = 0 : i64, tpu.core_type = #tpu.core_type<tc>, window_params = [{transform_indices = @transform_0, window_bounds = array<i64: 1, 8, 32>}, {pipeline_mode = #tpu.pipeline_mode<synchronous>, transform_indices = @transform_1, window_bounds = array<i64: 1, 32>}, {pipeline_mode = #tpu.pipeline_mode<synchronous>, transform_indices = @transform_2, window_bounds = array<i64: 1, 32>}, {pipeline_mode = #tpu.pipeline_mode<synchronous>, transform_indices = @transform_3, window_bounds = array<i64: 32, 96>}, {pipeline_mode = #tpu.pipeline_mode<synchronous>, transform_indices = @transform_4, window_bounds = array<i64: 1, 96>}, {transform_indices = @transform_5, window_bounds = array<i64: 1, 8, 32>}, {transform_indices = @transform_6, window_bounds = array<i64: 1, 8, 32>}, {transform_indices = @transform_7, window_bounds = array<i64: 1, 8, 32>}]} {
    %c0 = arith.constant 0 : index
    %c0_0 = arith.constant 0 : index
    %c0_1 = arith.constant 0 : index
    %0 = vector.load %arg2[%c0, %c0_0, %c0_1] : memref<1x8x32xf32, #tpu.memory_space<vmem>>, vector<1x8x32xf32>
    %1 = vector.shape_cast %0 : vector<1x8x32xf32> to vector<8x32xf32>
    %c0_2 = arith.constant 0 : index
    %c0_3 = arith.constant 0 : index
    %2 = vector.load %arg3[%c0_2, %c0_3] : memref<1x32xf32, #tpu.memory_space<vmem>>, vector<1x32xf32>
    %c0_4 = arith.constant 0 : index
    %c0_5 = arith.constant 0 : index
    %3 = vector.load %arg4[%c0_4, %c0_5] : memref<1x32xf32, #tpu.memory_space<vmem>>, vector<1x32xf32>
    %cst = arith.constant dense<0.000000e+00> : vector<8xf32>
    %4 = vector.multi_reduction <add>, %1, %cst [1] : vector<8x32xf32> to vector<8xf32>
    %5 = vector.shape_cast %4 : vector<8xf32> to vector<8x1xf32>
    %cst_6 = arith.constant 3.200000e+01 : f32
    %6 = vector.broadcast %cst_6 : f32 to vector<8x1xf32>
    %7 = arith.divf %5, %6 : vector<8x1xf32>
    %8 = vector.broadcast %7 : vector<8x1xf32> to vector<8x32xf32>
    %9 = arith.subf %1, %8 : vector<8x32xf32>
    %10 = arith.mulf %9, %9 : vector<8x32xf32>
    %cst_7 = arith.constant dense<0.000000e+00> : vector<8xf32>
    %11 = vector.multi_reduction <add>, %10, %cst_7 [1] : vector<8x32xf32> to vector<8xf32>
    %12 = vector.shape_cast %11 : vector<8xf32> to vector<8x1xf32>
    %cst_8 = arith.constant 3.200000e+01 : f32
    %13 = vector.broadcast %cst_8 : f32 to vector<8x1xf32>
    %14 = arith.divf %12, %13 : vector<8x1xf32>
    %15 = vector.broadcast %7 : vector<8x1xf32> to vector<8x32xf32>
    %16 = arith.subf %1, %15 : vector<8x32xf32>
    %cst_9 = arith.constant 9.99999974E-6 : f32
    %17 = vector.broadcast %cst_9 : f32 to vector<8x1xf32>
    %18 = arith.addf %14, %17 : vector<8x1xf32>
    %19 = math.rsqrt %18 : vector<8x1xf32>
    %20 = vector.broadcast %19 : vector<8x1xf32> to vector<8x32xf32>
    %21 = arith.mulf %16, %20 : vector<8x32xf32>
    %22 = vector.broadcast %2 : vector<1x32xf32> to vector<8x32xf32>
    %23 = arith.mulf %21, %22 : vector<8x32xf32>
    %24 = vector.broadcast %3 : vector<1x32xf32> to vector<8x32xf32>
    %25 = arith.addf %23, %24 : vector<8x32xf32>
    %26 = arith.truncf %25 : vector<8x32xf32> to vector<8x32xbf16>
    %c0_10 = arith.constant 0 : index
    %c0_11 = arith.constant 0 : index
    %27 = vector.load %arg5[%c0_10, %c0_11] : memref<32x96xbf16, #tpu.memory_space<vmem>>, vector<32x96xbf16>
    %cst_12 = arith.constant dense<0.000000e+00> : vector<8x96xf32>
    %28 = tpu.matmul %26, %27, %cst_12 {dimension_numbers = #tpu.dot_dimension_numbers<[1], [0], [0], [1], [0, 0, 1, 1], [], []>} : vector<8x32xbf16>, vector<32x96xbf16>, vector<8x96xf32> -> vector<8x96xf32>
    %c0_13 = arith.constant 0 : index
    %c0_14 = arith.constant 0 : index
    %29 = vector.load %arg6[%c0_13, %c0_14] : memref<1x96xf32, #tpu.memory_space<vmem>>, vector<1x96xf32>
    %30 = vector.broadcast %29 : vector<1x96xf32> to vector<8x96xf32>
    %31 = arith.addf %28, %30 : vector<8x96xf32>
    %32 = vector.extract_strided_slice %31 {offsets = [0, 0], sizes = [8, 32], strides = [1, 1]} : vector<8x96xf32> to vector<8x32xf32>
    %cst_15 = arith.constant 0.353553385 : f32
    %33 = vector.broadcast %cst_15 : f32 to vector<8x32xf32>
    %34 = arith.mulf %32, %33 : vector<8x32xf32>
    %35 = arith.truncf %34 : vector<8x32xf32> to vector<8x32xbf16>
    %c0_16 = arith.constant 0 : index
    %c0_17 = arith.constant 0 : index
    %c0_18 = arith.constant 0 : index
    %36 = vector.load %arg7[%c0_16, %c0_17, %c0_18] : memref<1x8x32xbf16, #tpu.memory_space<vmem>>, vector<1x8x32xbf16>
    %37 = vector.shape_cast %36 : vector<1x8x32xbf16> to vector<8x32xbf16>
    %38 = vector.shape_cast %35 : vector<8x32xbf16> to vector<1x8x32xbf16>
    tpu.vector_store %arg7[%c0_16, %c0_17, %c0_18], %38 {strides = array<i32>} : memref<1x8x32xbf16, #tpu.memory_space<vmem>>, vector<1x8x32xbf16>,
    %39 = vector.extract_strided_slice %31 {offsets = [0, 32], sizes = [8, 32], strides = [1, 1]} : vector<8x96xf32> to vector<8x32xf32>
    %40 = arith.truncf %39 : vector<8x32xf32> to vector<8x32xbf16>
    %c0_19 = arith.constant 0 : index
    %c0_20 = arith.constant 0 : index
    %c0_21 = arith.constant 0 : index
    %41 = vector.load %arg8[%c0_19, %c0_20, %c0_21] : memref<1x8x32xbf16, #tpu.memory_space<vmem>>, vector<1x8x32xbf16>
    %42 = vector.shape_cast %41 : vector<1x8x32xbf16> to vector<8x32xbf16>
    %43 = vector.shape_cast %40 : vector<8x32xbf16> to vector<1x8x32xbf16>
    tpu.vector_store %arg8[%c0_19, %c0_20, %c0_21], %43 {strides = array<i32>} : memref<1x8x32xbf16, #tpu.memory_space<vmem>>, vector<1x8x32xbf16>,
    %44 = vector.extract_strided_slice %31 {offsets = [0, 64], sizes = [8, 32], strides = [1, 1]} : vector<8x96xf32> to vector<8x32xf32>
    %45 = arith.truncf %44 : vector<8x32xf32> to vector<8x32xbf16>
    %c0_22 = arith.constant 0 : index
    %c0_23 = arith.constant 0 : index
    %c0_24 = arith.constant 0 : index
    %46 = vector.load %arg9[%c0_22, %c0_23, %c0_24] : memref<1x8x32xbf16, #tpu.memory_space<vmem>>, vector<1x8x32xbf16>
    %47 = vector.shape_cast %46 : vector<1x8x32xbf16> to vector<8x32xbf16>
    %48 = vector.shape_cast %45 : vector<8x32xbf16> to vector<1x8x32xbf16>
    tpu.vector_store %arg9[%c0_22, %c0_23, %c0_24], %48 {strides = array<i32>} : memref<1x8x32xbf16, #tpu.memory_space<vmem>>, vector<1x8x32xbf16>,
    return
  }
  func.func @transform_0(%arg0: i32, %arg1: i32) -> (i32, i32, i32) {
    %c0_i32 = arith.constant 0 : i32
    %c0_i32_0 = arith.constant 0 : i32
    return %arg0, %arg1, %c0_i32 : i32, i32, i32
  }
  func.func @transform_1(%arg0: i32, %arg1: i32) -> (i32, i32) {
    %c0_i32 = arith.constant 0 : i32
    %c0_i32_0 = arith.constant 0 : i32
    %c0_i32_1 = arith.constant 0 : i32
    return %c0_i32, %c0_i32_0 : i32, i32
  }
  func.func @transform_2(%arg0: i32, %arg1: i32) -> (i32, i32) {
    %c0_i32 = arith.constant 0 : i32
    %c0_i32_0 = arith.constant 0 : i32
    %c0_i32_1 = arith.constant 0 : i32
    return %c0_i32, %c0_i32_0 : i32, i32
  }
  func.func @transform_3(%arg0: i32, %arg1: i32) -> (i32, i32) {
    %c0_i32 = arith.constant 0 : i32
    %c0_i32_0 = arith.constant 0 : i32
    %c0_i32_1 = arith.constant 0 : i32
    return %c0_i32, %c0_i32_0 : i32, i32
  }
  func.func @transform_4(%arg0: i32, %arg1: i32) -> (i32, i32) {
    %c0_i32 = arith.constant 0 : i32
    %c0_i32_0 = arith.constant 0 : i32
    %c0_i32_1 = arith.constant 0 : i32
    return %c0_i32, %c0_i32_0 : i32, i32
  }
  func.func @transform_5(%arg0: i32, %arg1: i32) -> (i32, i32, i32) {
    %c0_i32 = arith.constant 0 : i32
    %c0_i32_0 = arith.constant 0 : i32
    return %arg0, %arg1, %c0_i32 : i32, i32, i32
  }
  func.func @transform_6(%arg0: i32, %arg1: i32) -> (i32, i32, i32) {
    %c0_i32 = arith.constant 0 : i32
    %c0_i32_0 = arith.constant 0 : i32
    return %arg0, %arg1, %c0_i32 : i32, i32, i32
  }
  func.func @transform_7(%arg0: i32, %arg1: i32) -> (i32, i32, i32) {
    %c0_i32 = arith.constant 0 : i32
    %c0_i32_0 = arith.constant 0 : i32
    return %arg0, %arg1, %c0_i32 : i32, i32, i32
  }
}

</mosaic_0001>

<llo_original>
// kernel: tpu_custom_call.1
$region0: #{tpu_custom_call.1}
  #allocation0 [shape = 'u32[]', space=smem, size = 0x4, offset = 0x4, fixed_abs, tag = 'smem constant byte address 0x4 - core index']
  #allocation1 [shape = 'u32[144,128]{1,0:T(1,128)}', space=vmem, size = 0x12000, scoped, tag = 'internal scratch']
  %s0 = inlined_call_operand.hbm [shape: f32[8,128], index: 0, kind: input, shape index: {}]
  %s1 = inlined_call_operand.hbm [shape: f32[8,128], index: 1, kind: output, shape index: {}]
  %s2 = sld [smem:[#allocation0]]
  $region18: #{tpu_custom_call.1} parent=0
    _
  %s4 = ssub.s32 1, %s2
  %s5 = scalar_select 0, %s4, %s2
  $region1: #{tpu_custom_call.1} parent=0
    #allocation2 [shape = 'u8[4096]{0}', space=vmem, size = 0x1000, scoped, tag = 'input window, operand 0, single buffered']
    #allocation3 [shape = 's32[1]{0}', space=sflag, size = 0x4, scoped, tag = 'scoped memory for tpu_custom_call.1']
    #allocation4 [shape = 's32[1]{0}', space=sflag, size = 0x4, scoped, tag = 'scoped memory for tpu_custom_call.1']
    #allocation5 [shape = 'u8[4096]{0}', space=vmem, size = 0x1000, scoped, tag = 'output window, operand 0, single buffered']
    %6 = vsyncpa [#allocation3], 0
    %7 = vsyncpa [#allocation4], 0
    // Predicated region
    $region2: #{tpu_custom_call.1} parent=1 // pred_check
      _
    $region3: #{tpu_custom_call.1} parent=1 // pred_check_branch
      %9 = sbr.rel (0) target = $region5
    $region4: #{tpu_custom_call.1} parent=1 // pred_region
      %s11 = ssub.s32 128, 128
      %12 = vsyncadd [#allocation3], %s11
      %s14 = sshll.u32 [#allocation2], 4
      %s15 = int_to_ptr.vmem [resolvable:$true] %s14
      %17 = dma.hbm_to_vmem [thread:$0]  %s0, 128, %s15, [#allocation3]
    $region5: #{tpu_custom_call.1} parent=1 // pred_fallthru
      _
    // Predicated region
    $region6: #{tpu_custom_call.1} parent=1 // pred_check
      _
    $region7: #{tpu_custom_call.1} parent=1 // pred_check_branch
      %19 = sbr.rel (0) target = $region9
    $region8: #{tpu_custom_call.1} parent=1 // pred_region
      %20 = dma.done [#allocation3], 128
    $region9: #{tpu_custom_call.1} parent=1 // pred_fallthru
      _
    %v21 = vld [vmem:[#allocation2] sm:$0xff]
    %v22 = vadd.f32 %v21, 1.0
    %23 = vst [vmem:[#allocation5] sm:$0xff] %v22
    // Predicated region
    $region10: #{tpu_custom_call.1} parent=1 // pred_check
      _
    $region11: #{tpu_custom_call.1} parent=1 // pred_check_branch
      %25 = sbr.rel (0) target = $region13
    $region12: #{tpu_custom_call.1} parent=1 // pred_region
      %s27 = ssub.s32 128, 128
      %28 = vsyncadd [#allocation4], %s27
      %s30 = sshll.u32 [#allocation5], 4
      %s31 = int_to_ptr.vmem [resolvable:$true] %s30
      %33 = dma.vmem_to_hbm [thread:$0]  %s31, 128, %s1, [#allocation4]
    $region13: #{tpu_custom_call.1} parent=1 // pred_fallthru
      _
    // Predicated region
    $region14: #{tpu_custom_call.1} parent=1 // pred_check
      _
    $region15: #{tpu_custom_call.1} parent=1 // pred_check_branch
      %35 = sbr.rel (0) target = $region17
    $region16: #{tpu_custom_call.1} parent=1 // pred_region
      %36 = dma.done [#allocation4], 128
    $region17: #{tpu_custom_call.1} parent=1 // pred_fallthru
      _
    %37 = vsyncpa [#allocation3], 1
    %38 = vsyncpa [#allocation4], 1

// kernel: _block_forward_impl.2
$region0: #{_block_forward_impl.2}
  #allocation0 [shape = 'u32[]', space=smem, size = 0x4, offset = 0x4, fixed_abs, tag = 'smem constant byte address 0x4 - core index']
  #allocation1 [shape = 'u32[144,128]{1,0:T(1,128)}', space=vmem, size = 0x12000, scoped, tag = 'internal scratch']
  %s0 = inlined_call_operand.vmem [shape: f32[2,8,32], index: 0, kind: input, shape index: {}]
  %s1 = inlined_call_operand.vmem [shape: f32[1,32], index: 1, kind: input, shape index: {}]
  %s2 = inlined_call_operand.vmem [shape: f32[1,32], index: 2, kind: input, shape index: {}]
  %s3 = inlined_call_operand.hbm [shape: bf16[32,96], index: 3, kind: input, shape index: {}]
  %s4 = inlined_call_operand.hbm [shape: f32[1,96], index: 4, kind: input, shape index: {}]
  %s5 = inlined_call_operand.vmem [shape: bf16[2,8,32], index: 5, kind: output, shape index: {0}]
  %s6 = inlined_call_operand.vmem [shape: bf16[2,8,32], index: 6, kind: output, shape index: {1}]
  %s7 = inlined_call_operand.vmem [shape: bf16[2,8,32], index: 7, kind: output, shape index: {2}]
  %8 = xla_tuple %s5, %s6, %s7
  %s9 = sld [smem:[#allocation0]]
  $region77: #{_block_forward_impl.2} parent=0
    _
  %s11 = ssub.s32 1, %s9
  %s12 = scalar_select 0, %s11, %s9
  $region1: #{_block_forward_impl.2} parent=0
    #allocation2 [shape = 'u8[8192]{0}', space=vmem, size = 0x2000, scoped, tag = 'input window, operand 3, single buffered']
    #allocation3 [shape = 's32[2]{0}', space=sflag, size = 0x8, scoped, tag = 'scoped memory for _block_forward_impl.2']
    #allocation4 [shape = 'u8[512]{0}', space=vmem, size = 0x400, scoped, tag = 'input window, operand 4, single buffered']
    #allocation5 [shape = 's32[1]{0}', space=sflag, size = 0x4, scoped, tag = 'scoped memory for _block_forward_impl.2']
    %13 = vsyncpa [#allocation3], 0
    %14 = vsyncpa [#allocation5], 0
    loop: start=0, step=1, limit=4
    $region2: #{_block_forward_impl.2} parent=1 // loop_pre_header
      _
    $region3: #{_block_forward_impl.2} parent=1 // loop_header
      %s16 = sphi 0, %s20
      %p17 = scmp.ge.s32.totalorder %s16, 4
      %s23 = sphi 0, %s35
      %s24 = sphi 0, %s31
      %s25 = sphi 0, %s23
      %s26 = sphi 0, %s24
      %s27 = sphi 0, %s25
      %s28 = sphi 0, %s26
      %s40 = sphi 0, %s42
      %s43 = sphi 0, %s40
      %s44 = sphi 0, %s43
      %s60 = sphi 0, %s44
      %s64 = sphi 0, %s64
      %s66 = sphi 0, %s64
      %s67 = sphi 0, %s66
      %s81 = sphi 0, %s67
      %s85 = sphi 0, %s85
      %s87 = sphi 0, %s85
      %s88 = sphi 0, %s87
      %s102 = sphi 0, %s88
      %s106 = sphi 0, %s106
      %s108 = sphi 0, %s106
      %s109 = sphi 0, %s108
      %s123 = sphi 0, %s109
      %s127 = sphi 0, %s127
      %s129 = sphi 0, %s127
      %s130 = sphi 0, %s129
      %s144 = sphi 0, %s130
      %s152 = sphi 0, %s154
      %s155 = sphi 0, %s152
      %s156 = sphi 0, %s155
      %s172 = sphi 0, %s156
      %s180 = sphi 0, %s182
      %s183 = sphi 0, %s180
      %s184 = sphi 0, %s183
      %s200 = sphi 0, %s184
      %s208 = sphi 0, %s210
      %s211 = sphi 0, %s208
      %s212 = sphi 0, %s211
      %s228 = sphi 0, %s212
    $region4: #{_block_forward_impl.2} parent=1 // loop_header_branch
      %19 = sbr.rel (%p17) target = $region8
    $region5: #{_block_forward_impl.2} parent=1 // loop_body
      %s21 = ssub.s32 %s16, 1
      %s22 = ssub.s32 %s16, 2
      %s29 = sadd.s32 1, %s24
      %p30 = scmp.ge.s32.totalorder %s29, 1
      %s31 = scalar_select %p30, 0, %s29
      %s32 = sadd.s32 1, %s23
      %s33 = scalar_select %p30, %s32, %s23
      %p34 = scmp.ge.s32.totalorder %s33, 2
      %s35 = scalar_select %p34, 0, %s33
      %s36 = ssub.s32 %s23, %s35
      %s37 = ssub.s32 %s24, %s31
      %s38 = sor.u32 %s36, %s37
      %p39 = scmp.eq.s32.totalorder %s38, 0
      %s41 = sadd.s32 %s40, 1
      %s42 = scalar_select %p39, %s40, %s41
      %p45 = pneg %p39
      %p46 = scmp.eq.s32.totalorder %s16, 1
      %p47 = por %p45, %p46
      %p48 = scmp.ne.s32.totalorder %s40, %s43
      %p49 = scmp.eq.s32.totalorder %s16, 0
      %p50 = por %p48, %p49
      %p51 = scmp.ne.s32.totalorder %s40, %s43
      %p52 = scmp.eq.s32.totalorder %s21, 1
      %p53 = por %p51, %p52
      %p54 = scmp.ne.s32.totalorder %s43, %s44
      %p55 = scmp.eq.s32.totalorder %s21, 0
      %p56 = por %p54, %p55
      %p57 = scmp.ne.s32.totalorder %s43, %s44
      %p58 = scmp.eq.s32.totalorder %s22, 1
      %p59 = por %p57, %p58
      %p61 = scmp.ne.s32.totalorder %s44, %s60
      %p62 = scmp.eq.s32.totalorder %s22, 0
      %p63 = por %p61, %p62
      %s65 = sadd.s32 %s64, 1
      %p68 = scmp.eq.s32.totalorder %s16, 1
      %p69 = scmp.ne.s32.totalorder %s64, %s66
      %p70 = scmp.eq.s32.totalorder %s16, 0
      %p71 = por %p69, %p70
      %p72 = scmp.ne.s32.totalorder %s64, %s66
      %p73 = scmp.eq.s32.totalorder %s21, 1
      %p74 = por %p72, %p73
      %p75 = scmp.ne.s32.totalorder %s66, %s67
      %p76 = scmp.eq.s32.totalorder %s21, 0
      %p77 = por %p75, %p76
      %p78 = scmp.ne.s32.totalorder %s66, %s67
      %p79 = scmp.eq.s32.totalorder %s22, 1
      %p80 = por %p78, %p79
      %p82 = scmp.ne.s32.totalorder %s67, %s81
      %p83 = scmp.eq.s32.totalorder %s22, 0
      %p84 = por %p82, %p83
      %s86 = sadd.s32 %s85, 1
      %p89 = scmp.eq.s32.totalorder %s16, 1
      %p90 = scmp.ne.s32.totalorder %s85, %s87
      %p91 = scmp.eq.s32.totalorder %s16, 0
      %p92 = por %p90, %p91
      %p93 = scmp.ne.s32.totalorder %s85, %s87
      %p94 = scmp.eq.s32.totalorder %s21, 1
      %p95 = por %p93, %p94
      %p96 = scmp.ne.s32.totalorder %s87, %s88
      %p97 = scmp.eq.s32.totalorder %s21, 0
      %p98 = por %p96, %p97
      %p99 = scmp.ne.s32.totalorder %s87, %s88
      %p100 = scmp.eq.s32.totalorder %s22, 1
      %p101 = por %p99, %p100
      %p103 = scmp.ne.s32.totalorder %s88, %s102
      %p104 = scmp.eq.s32.totalorder %s22, 0
      %p105 = por %p103, %p104
      %s107 = sadd.s32 %s106, 1
      %p110 = scmp.eq.s32.totalorder %s16, 1
      %p111 = scmp.ne.s32.totalorder %s106, %s108
      %p112 = scmp.eq.s32.totalorder %s16, 0
      %p113 = por %p111, %p112
      %p114 = scmp.ne.s32.totalorder %s106, %s108
      %p115 = scmp.eq.s32.totalorder %s21, 1
      %p116 = por %p114, %p115
      %p117 = scmp.ne.s32.totalorder %s108, %s109
      %p118 = scmp.eq.s32.totalorder %s21, 0
      %p119 = por %p117, %p118
      %p120 = scmp.ne.s32.totalorder %s108, %s109
      %p121 = scmp.eq.s32.totalorder %s22, 1
      %p122 = por %p120, %p121
      %p124 = scmp.ne.s32.totalorder %s109, %s123
      %p125 = scmp.eq.s32.totalorder %s22, 0
      %p126 = por %p124, %p125
      %s128 = sadd.s32 %s127, 1
      %p131 = scmp.eq.s32.totalorder %s16, 1
      %p132 = scmp.ne.s32.totalorder %s127, %s129
      %p133 = scmp.eq.s32.totalorder %s16, 0
      %p134 = por %p132, %p133
      %p135 = scmp.ne.s32.totalorder %s127, %s129
      %p136 = scmp.eq.s32.totalorder %s21, 1
      %p137 = por %p135, %p136
      %p138 = scmp.ne.s32.totalorder %s129, %s130
      %p139 = scmp.eq.s32.totalorder %s21, 0
      %p140 = por %p138, %p139
      %p141 = scmp.ne.s32.totalorder %s129, %s130
      %p142 = scmp.eq.s32.totalorder %s22, 1
      %p143 = por %p141, %p142
      %p145 = scmp.ne.s32.totalorder %s130, %s144
      %p146 = scmp.eq.s32.totalorder %s22, 0
      %p147 = por %p145, %p146
      %s148 = ssub.s32 %s23, %s35
      %s149 = ssub.s32 %s24, %s31
      %s150 = sor.u32 %s148, %s149
      %p151 = scmp.eq.s32.totalorder %s150, 0
      %s153 = sadd.s32 %s152, 1
      %s154 = scalar_select %p151, %s152, %s153
      %p157 = pneg %p151
      %p158 = scmp.eq.s32.totalorder %s16, 1
      %p159 = por %p157, %p158
      %p160 = scmp.ne.s32.totalorder %s152, %s155
      %p161 = scmp.eq.s32.totalorder %s16, 0
      %p162 = por %p160, %p161
      %p163 = scmp.ne.s32.totalorder %s152, %s155
      %p164 = scmp.eq.s32.totalorder %s21, 1
      %p165 = por %p163, %p164
      %p166 = scmp.ne.s32.totalorder %s155, %s156
      %p167 = scmp.eq.s32.totalorder %s21, 0
      %p168 = por %p166, %p167
      %p169 = scmp.ne.s32.totalorder %s155, %s156
      %p170 = scmp.eq.s32.totalorder %s22, 1
      %p171 = por %p169, %p170
      %p173 = scmp.ne.s32.totalorder %s156, %s172
      %p174 = scmp.eq.s32.totalorder %s22, 0
      %p175 = por %p173, %p174
      %s176 = ssub.s32 %s23, %s35
      %s177 = ssub.s32 %s24, %s31
      %s178 = sor.u32 %s176, %s177
      %p179 = scmp.eq.s32.totalorder %s178, 0
      %s181 = sadd.s32 %s180, 1
      %s182 = scalar_select %p179, %s180, %s181
      %p185 = pneg %p179
      %p186 = scmp.eq.s32.totalorder %s16, 1
      %p187 = por %p185, %p186
      %p188 = scmp.ne.s32.totalorder %s180, %s183
      %p189 = scmp.eq.s32.totalorder %s16, 0
      %p190 = por %p188, %p189
      %p191 = scmp.ne.s32.totalorder %s180, %s183
      %p192 = scmp.eq.s32.totalorder %s21, 1
      %p193 = por %p191, %p192
      %p194 = scmp.ne.s32.totalorder %s183, %s184
      %p195 = scmp.eq.s32.totalorder %s21, 0
      %p196 = por %p194, %p195
      %p197 = scmp.ne.s32.totalorder %s183, %s184
      %p198 = scmp.eq.s32.totalorder %s22, 1
      %p199 = por %p197, %p198
      %p201 = scmp.ne.s32.totalorder %s184, %s200
      %p202 = scmp.eq.s32.totalorder %s22, 0
      %p203 = por %p201, %p202
      %s204 = ssub.s32 %s23, %s35
      %s205 = ssub.s32 %s24, %s31
      %s206 = sor.u32 %s204, %s205
      %p207 = scmp.eq.s32.totalorder %s206, 0
      %s209 = sadd.s32 %s208, 1
      %s210 = scalar_select %p207, %s208, %s209
      %p213 = pneg %p207
      %p214 = scmp.eq.s32.totalorder %s16, 1
      %p215 = por %p213, %p214
      %p216 = scmp.ne.s32.totalorder %s208, %s211
      %p217 = scmp.eq.s32.totalorder %s16, 0
      %p218 = por %p216, %p217
      %p219 = scmp.ne.s32.totalorder %s208, %s211
      %p220 = scmp.eq.s32.totalorder %s21, 1
      %p221 = por %p219, %p220
      %p222 = scmp.ne.s32.totalorder %s211, %s212
      %p223 = scmp.eq.s32.totalorder %s21, 0
      %p224 = por %p222, %p223
      %p225 = scmp.ne.s32.totalorder %s211, %s212
      %p226 = scmp.eq.s32.totalorder %s22, 1
      %p227 = por %p225, %p226
      %p229 = scmp.ne.s32.totalorder %s212, %s228
      %p230 = scmp.eq.s32.totalorder %s22, 0
      %p231 = por %p229, %p230
      %p232 = scmp.le.s32.totalorder 1, %s16
      %p233 = scmp.lt.s32.totalorder %s16, 3
      %p234 = pnand %p232, %p233
      %p235 = pneg %p234
      // Predicated region
      $region9: #{_block_forward_impl.2} parent=5 // pred_check
        _
      $region10: #{_block_forward_impl.2} parent=5 // pred_check_branch
        %237 = sbr.rel (%p234) target = $region12
      $region11: #{_block_forward_impl.2} parent=5 // pred_region
        %s238 = ssub.s32 %s16, 1
        // Predicated region
        $region13: #{_block_forward_impl.2} parent=11 // pred_check
          %p239 = pneg %p77
        $region14: #{_block_forward_impl.2} parent=11 // pred_check_branch
          %241 = sbr.rel (%p239) target = $region16
        $region15: #{_block_forward_impl.2} parent=11 // pred_region
          _
        $region16: #{_block_forward_impl.2} parent=11 // pred_fallthru
          _
        // Predicated region
        $region17: #{_block_forward_impl.2} parent=11 // pred_check
          %p242 = pneg %p98
        $region18: #{_block_forward_impl.2} parent=11 // pred_check_branch
          %244 = sbr.rel (%p242) target = $region20
        $region19: #{_block_forward_impl.2} parent=11 // pred_region
          _
        $region20: #{_block_forward_impl.2} parent=11 // pred_fallthru
          _
        // Predicated region
        $region21: #{_block_forward_impl.2} parent=11 // pred_check
          %p245 = pneg %p119
        $region22: #{_block_forward_impl.2} parent=11 // pred_check_branch
          %247 = sbr.rel (%p245) target = $region24
        $region23: #{_block_forward_impl.2} parent=11 // pred_region
          %s249 = ssub.s32 256, 256
          %250 = vsyncadd [#allocation3], %s249
          %s251 = sshll.u32 [#allocation2], 4
          %s252 = int_to_ptr.vmem [resolvable:$true] %s251
          %257 = dma.hbm_to_vmem [thread:$0]  %s3, 256, %s252, [#allocation3], 64, 64, 4
        $region24: #{_block_forward_impl.2} parent=11 // pred_fallthru
          _
        // Predicated region
        $region25: #{_block_forward_impl.2} parent=11 // pred_check
          %p258 = pneg %p140
        $region26: #{_block_forward_impl.2} parent=11 // pred_check_branch
          %260 = sbr.rel (%p258) target = $region28
        $region27: #{_block_forward_impl.2} parent=11 // pred_region
          %s262 = ssub.s32 16, 16
          %263 = vsyncadd [#allocation5], %s262
          %s265 = sshll.u32 [#allocation4], 4
          %s266 = int_to_ptr.vmem [resolvable:$true] %s265
          %268 = dma.hbm_to_vmem [thread:$0]  %s4, 16, %s266, [#allocation5]
        $region28: #{_block_forward_impl.2} parent=11 // pred_fallthru
          _
      $region12: #{_block_forward_impl.2} parent=5 // pred_fallthru
        _
      %p269 = scmp.lt.s32.totalorder %s16, 2
      // Predicated region
      $region29: #{_block_forward_impl.2} parent=5 // pred_check
        %p270 = pneg %p269
      $region30: #{_block_forward_impl.2} parent=5 // pred_check_branch
        %272 = sbr.rel (%p270) target = $region32
      $region31: #{_block_forward_impl.2} parent=5 // pred_region
        // Predicated region
        $region33: #{_block_forward_impl.2} parent=31 // pred_check
          %p273 = pneg %p50
        $region34: #{_block_forward_impl.2} parent=31 // pred_check_branch
          %275 = sbr.rel (%p273) target = $region36
        $region35: #{_block_forward_impl.2} parent=31 // pred_region
          %p276 = scmp.lt.s32.totalorder %s23, 1
          %s277 = scalar_select %p276, %s23, 1
          %p278 = scmp.lt.s32.totalorder %s24, 0
          %s279 = scalar_select %p278, %s24, 0
          %s280 = sadd.s32 %s279, %s277
          %s281 = smul.addr %s280, 8
          %s282 = scalar_lea.vmem %s0, %s281
        $region36: #{_block_forward_impl.2} parent=31 // pred_fallthru
          _
      $region32: #{_block_forward_impl.2} parent=5 // pred_fallthru
        _
      %p283 = scmp.le.s32.totalorder 1, %s16
      %p284 = scmp.lt.s32.totalorder %s16, 3
      %p285 = pnand %p283, %p284
      %p286 = pneg %p285
      // Predicated region
      $region37: #{_block_forward_impl.2} parent=5 // pred_check
        _
      $region38: #{_block_forward_impl.2} parent=5 // pred_check_branch
        %288 = sbr.rel (%p285) target = $region40
      $region39: #{_block_forward_impl.2} parent=5 // pred_region
        %s289 = ssub.s32 %s16, 1
        // Predicated region
        $region41: #{_block_forward_impl.2} parent=39 // pred_check
          %p290 = pneg %p119
        $region42: #{_block_forward_impl.2} parent=39 // pred_check_branch
          %292 = sbr.rel (%p290) target = $region44
        $region43: #{_block_forward_impl.2} parent=39 // pred_region
          %293 = dma.done [#allocation3], 256
        $region44: #{_block_forward_impl.2} parent=39 // pred_fallthru
          _
        // Predicated region
        $region45: #{_block_forward_impl.2} parent=39 // pred_check
          %p294 = pneg %p140
        $region46: #{_block_forward_impl.2} parent=39 // pred_check_branch
          %296 = sbr.rel (%p294) target = $region48
        $region47: #{_block_forward_impl.2} parent=39 // pred_region
          %297 = dma.done [#allocation5], 16
        $region48: #{_block_forward_impl.2} parent=39 // pred_fallthru
          _
        %p298 = scmp.lt.s32.totalorder %s25, 1
        %s299 = scalar_select %p298, %s25, 1
        %p300 = scmp.lt.s32.totalorder %s26, 0
        %s301 = scalar_select %p300, %s26, 0
        %s302 = sadd.s32 %s301, %s299
        %s303 = smul.addr %s302, 8
        %s304 = scalar_lea.vmem %s0, %s303
        %p305 = pneg %p56
        %p306 = pneg %p53
        %p307 = pneg %p77
        %p308 = pneg %p74
        %p309 = pneg %p98
        %p310 = pneg %p95
        %p311 = pneg %p119
        %p312 = pneg %p116
        %p313 = pneg %p140
        %p314 = pneg %p137
        %p315 = pneg %p168
        %p316 = pneg %p165
        %p317 = scmp.lt.s32.totalorder %s25, 1
        %s318 = scalar_select %p317, %s25, 1
        %p319 = scmp.lt.s32.totalorder %s26, 0
        %s320 = scalar_select %p319, %s26, 0
        %s321 = sadd.s32 %s320, %s318
        %s322 = smul.addr %s321, 4
        %s323 = scalar_lea.vmem %s5, %s322
        %p324 = pneg %p196
        %p325 = pneg %p193
        %p326 = scmp.lt.s32.totalorder %s25, 1
        %s327 = scalar_select %p326, %s25, 1
        %p328 = scmp.lt.s32.totalorder %s26, 0
        %s329 = scalar_select %p328, %s26, 0
        %s330 = sadd.s32 %s329, %s327
        %s331 = smul.addr %s330, 4
        %s332 = scalar_lea.vmem %s6, %s331
        %p333 = pneg %p224
        %p334 = pneg %p221
        %p335 = scmp.lt.s32.totalorder %s25, 1
        %s336 = scalar_select %p335, %s25, 1
        %p337 = scmp.lt.s32.totalorder %s26, 0
        %s338 = scalar_select %p337, %s26, 0
        %s339 = sadd.s32 %s338, %s336
        %s340 = smul.addr %s339, 4
        %s341 = scalar_lea.vmem %s7, %s340
        %p342 = scmp.lt.s32.totalorder %s25, 1
        %s343 = scalar_select %p342, %s25, 1
        %p344 = scmp.lt.s32.totalorder %s26, 0
        %s345 = scalar_select %p344, %s26, 0
        %s346 = sadd.s32 %s345, %s343
        %s347 = smul.addr %s346, 8
        %s348 = scalar_lea.vmem %s0, %s347
        %p349 = scmp.lt.s32.totalorder %s25, 1
        %s350 = scalar_select %p349, %s25, 1
        %p351 = scmp.lt.s32.totalorder %s26, 0
        %s352 = scalar_select %p351, %s26, 0
        %s353 = sadd.s32 %s352, %s350
        %s354 = smul.addr %s353, 4
        %s355 = scalar_lea.vmem %s5, %s354
        %p356 = scmp.lt.s32.totalorder %s25, 1
        %s357 = scalar_select %p356, %s25, 1
        %p358 = scmp.lt.s32.totalorder %s26, 0
        %s359 = scalar_select %p358, %s26, 0
        %s360 = sadd.s32 %s359, %s357
        %s361 = smul.addr %s360, 4
        %s362 = scalar_lea.vmem %s6, %s361
        %p363 = scmp.lt.s32.totalorder %s25, 1
        %s364 = scalar_select %p363, %s25, 1
        %p365 = scmp.lt.s32.totalorder %s26, 0
        %s366 = scalar_select %p365, %s26, 0
        %s367 = sadd.s32 %s366, %s364
        %s368 = smul.addr %s367, 4
        %s369 = scalar_lea.vmem %s7, %s368
        %v371 = vld [vmem:[%s348] sm:$0xff]
        %v372 = vld [vmem:[%s1] sm:$0x1]
        %v373 = vld [vmem:[%s2] sm:$0x1]
        %vm374 = vcmask 261120
        %v375 = vsel %vm374, %v371, 0.0
        %376 = vadd.xlane.f32.xlu0 %v375
        %v377 = vpop.xlane.xlu0 %376
        %v378 = vrcp.pop 32.0
        %v379 = vmul.f32 %v377, %v378
        %v380 = vsub.f32 %v371, %v379
        %v381 = vmul.f32 %v380, %v380
        %v382 = vsel %vm374, %v381, 0.0
        %383 = vadd.xlane.f32.xlu0 %v382
        %v384 = vpop.xlane.xlu0 %383
        %v385 = vmul.f32 %v384, %v378
        %v386 = vadd.f32 %v385, 1e-05
        %v387 = vrsqrt.pop %v386
        %v388 = vmul.f32 %v380, %v387
        %v390 = vlaneseq
        %v391 = vshrl.u32 %v390, 7
        %v392 = vsub.s32 0, %v391
        %v393 = vrot.slane %v372, %v392
        %v395 = vmul.f32 %v388, %v393
        %v397 = vlaneseq
        %v398 = vshrl.u32 %v397, 7
        %v399 = vsub.s32 0, %v398
        %v400 = vrot.slane %v373, %v399
        %v402 = vadd.f32 %v395, %v400
        %v403 = vpack.c.bf16 %v402, %v402
        %v404 = vld [vmem:[#allocation2] sm:$0xf]
        %v405 = vld [vmem:[#allocation2 + $0x4] sm:$0xf]
        %v406 = vld [vmem:[#allocation2 + $0x8] sm:$0xf]
        %v407 = vld [vmem:[#allocation2 + $0xc] sm:$0xf]
        %v408 = vld [vmem:[#allocation4] sm:$0x1]
        %v410 = vlaneseq
        %v411 = vshrl.u32 %v410, 7
        %v412 = vsub.s32 0, %v411
        %v413 = vrot.slane %v408, %v412
        %v419 = vunpack.c.l.b16 %v404
        %v420 = vunpack.c.l.b16 %v405
        %v421 = vunpack.c.l.b16 %v406
        %v422 = vunpack.c.l.b16 %v407
        %v423 = vpack.c.b16 %v420, %v419
        %v424 = vpack.c.b16 %v422, %v421
        %v428 = vsel %vm374, %v403, 0
        %430 = vmatprep.subr.bf16.mxu0 0
        %431 = vmatpush1.bf16.msra.mxu0 %v423
        %432 = vmatprep.subr.bf16.mxu0 0
        %433 = vmatpush1.bf16.msra.mxu0 %v424
        %434 = vmatprep.subr.bf16.mxu0 0
        %435 = vmatpush1.bf16.msra.mxu0 0
        %436 = vmatprep.subr.bf16.mxu0 0
        %437 = vmatpush1.bf16.msra.mxu0 0
        %438 = vmatprep.subr.bf16.mxu0 0
        %439 = vmatpush1.bf16.msra.mxu0 0
        %440 = vmatprep.subr.bf16.mxu0 0
        %441 = vmatpush1.bf16.msra.mxu0 0
        %442 = vmatprep.subr.bf16.mxu0 0
        %443 = vmatpush1.bf16.msra.mxu0 0
        %444 = vmatprep.subr.bf16.mxu0 0
        %445 = vmatpush1.bf16.msra.mxu0 0
        %446 = vmatprep.subr.bf16.mxu0 0
        %447 = vmatpush1.bf16.msra.mxu0 0
        %448 = vmatprep.subr.bf16.mxu0 0
        %449 = vmatpush1.bf16.msra.mxu0 0
        %450 = vmatprep.subr.bf16.mxu0 0
        %451 = vmatpush1.bf16.msra.mxu0 0
        %452 = vmatprep.subr.bf16.mxu0 0
        %453 = vmatpush1.bf16.msra.mxu0 0
        %454 = vmatprep.subr.bf16.mxu0 0
        %455 = vmatpush1.bf16.msra.mxu0 0
        %456 = vmatprep.subr.bf16.mxu0 0
        %457 = vmatpush1.bf16.msra.mxu0 0
        %458 = vmatprep.subr.bf16.mxu0 0
        %459 = vmatpush1.bf16.msra.mxu0 0
        %460 = vmatprep.subr.bf16.mxu0 0
        %461 = vmatpush1.bf16.msra.mxu0 0
        %462 = vmatprep.mubr.bf16.mxu0 0
        %463 = vmatmul.mubr.bf16.gmra.mrb[0].mxu0 %v428
        %v464 = vpop.f32.mrb[0].mxu0
        %v465 = vadd.f32 %v413, %v464
        %v466 = vpop.f32.mrb[0].mxu0
        %v467 = vpop.f32.mrb[0].mxu0
        %v468 = vpop.f32.mrb[0].mxu0
        %469 = vdwg.mxu0
        %v470 = vmul.f32 %v465, 0.35355338
        %v471 = vpack.c.bf16 %v470, %v470
        %vm472 = vcmask 257024
        %473 = vst.msk [vmem:[%s355] sm:$0xf] %vm472, %v471
        %v474 = vpack.c.bf16 %v465, %v465
        %v476 = vunpack.c.l.b16 %v474
        %v477 = vpack.c.b16 %v476, %v476
        %478 = vrot.lane.b32.xlu0 %v477, 96
        %v479 = vpop.permute.xlu0 %478
        %481 = vst.msk [vmem:[%s362] sm:$0xf] %vm472, %v479
        %482 = vrot.lane.b32.xlu0 %v477, 64
        %v483 = vpop.permute.xlu0 %482
        %485 = vst.msk [vmem:[%s369] sm:$0xf] %vm472, %v483
        %p486 = scmp.lt.s32.totalorder %s25, 1
        %s487 = scalar_select %p486, %s25, 1
        %p488 = scmp.lt.s32.totalorder %s26, 0
        %s489 = scalar_select %p488, %s26, 0
        %s490 = sadd.s32 %s489, %s487
        %s491 = smul.addr %s490, 4
        %s492 = scalar_lea.vmem %s5, %s491
        %p493 = scmp.lt.s32.totalorder %s25, 1
        %s494 = scalar_select %p493, %s25, 1
        %p495 = scmp.lt.s32.totalorder %s26, 0
        %s496 = scalar_select %p495, %s26, 0
        %s497 = sadd.s32 %s496, %s494
        %s498 = smul.addr %s497, 4
        %s499 = scalar_lea.vmem %s6, %s498
        %p500 = scmp.lt.s32.totalorder %s25, 1
        %s501 = scalar_select %p500, %s25, 1
        %p502 = scmp.lt.s32.totalorder %s26, 0
        %s503 = scalar_select %p502, %s26, 0
        %s504 = sadd.s32 %s503, %s501
        %s505 = smul.addr %s504, 4
        %s506 = scalar_lea.vmem %s7, %s505
        // Predicated region
        $region49: #{_block_forward_impl.2} parent=39 // pred_check
          %p507 = pneg %p165
        $region50: #{_block_forward_impl.2} parent=39 // pred_check_branch
          %509 = sbr.rel (%p507) target = $region52
        $region51: #{_block_forward_impl.2} parent=39 // pred_region
          _
        $region52: #{_block_forward_impl.2} parent=39 // pred_fallthru
          _
        // Predicated region
        $region53: #{_block_forward_impl.2} parent=39 // pred_check
          %p510 = pneg %p193
        $region54: #{_block_forward_impl.2} parent=39 // pred_check_branch
          %512 = sbr.rel (%p510) target = $region56
        $region55: #{_block_forward_impl.2} parent=39 // pred_region
          _
        $region56: #{_block_forward_impl.2} parent=39 // pred_fallthru
          _
        // Predicated region
        $region57: #{_block_forward_impl.2} parent=39 // pred_check
          %p513 = pneg %p221
        $region58: #{_block_forward_impl.2} parent=39 // pred_check_branch
          %515 = sbr.rel (%p513) target = $region60
        $region59: #{_block_forward_impl.2} parent=39 // pred_region
          _
        $region60: #{_block_forward_impl.2} parent=39 // pred_fallthru
          _
      $region40: #{_block_forward_impl.2} parent=5 // pred_fallthru
        _
      %p516 = scmp.le.s32.totalorder 2, %s16
      // Predicated region
      $region61: #{_block_forward_impl.2} parent=5 // pred_check
        %p517 = pneg %p516
      $region62: #{_block_forward_impl.2} parent=5 // pred_check_branch
        %519 = sbr.rel (%p517) target = $region64
      $region63: #{_block_forward_impl.2} parent=5 // pred_region
        %s520 = ssub.s32 %s16, 2
        // Predicated region
        $region65: #{_block_forward_impl.2} parent=63 // pred_check
          %p521 = pneg %p171
        $region66: #{_block_forward_impl.2} parent=63 // pred_check_branch
          %523 = sbr.rel (%p521) target = $region68
        $region67: #{_block_forward_impl.2} parent=63 // pred_region
          %p524 = scmp.lt.s32.totalorder %s27, 1
          %s525 = scalar_select %p524, %s27, 1
          %p526 = scmp.lt.s32.totalorder %s28, 0
          %s527 = scalar_select %p526, %s28, 0
          %s528 = sadd.s32 %s527, %s525
          %s529 = smul.addr %s528, 4
          %s530 = scalar_lea.vmem %s5, %s529
        $region68: #{_block_forward_impl.2} parent=63 // pred_fallthru
          _
        // Predicated region
        $region69: #{_block_forward_impl.2} parent=63 // pred_check
          %p531 = pneg %p199
        $region70: #{_block_forward_impl.2} parent=63 // pred_check_branch
          %533 = sbr.rel (%p531) target = $region72
        $region71: #{_block_forward_impl.2} parent=63 // pred_region
          %p534 = scmp.lt.s32.totalorder %s27, 1
          %s535 = scalar_select %p534, %s27, 1
          %p536 = scmp.lt.s32.totalorder %s28, 0
          %s537 = scalar_select %p536, %s28, 0
          %s538 = sadd.s32 %s537, %s535
          %s539 = smul.addr %s538, 4
          %s540 = scalar_lea.vmem %s6, %s539
        $region72: #{_block_forward_impl.2} parent=63 // pred_fallthru
          _
        // Predicated region
        $region73: #{_block_forward_impl.2} parent=63 // pred_check
          %p541 = pneg %p227
        $region74: #{_block_forward_impl.2} parent=63 // pred_check_branch
          %543 = sbr.rel (%p541) target = $region76
        $region75: #{_block_forward_impl.2} parent=63 // pred_region
          %p544 = scmp.lt.s32.totalorder %s27, 1
          %s545 = scalar_select %p544, %s27, 1
          %p546 = scmp.lt.s32.totalorder %s28, 0
          %s547 = scalar_select %p546, %s28, 0
          %s548 = sadd.s32 %s547, %s545
          %s549 = smul.addr %s548, 4
          %s550 = scalar_lea.vmem %s7, %s549
        $region76: #{_block_forward_impl.2} parent=63 // pred_fallthru
          _
      $region64: #{_block_forward_impl.2} parent=5 // pred_fallthru
        _
    $region6: #{_block_forward_impl.2} parent=1 // loop_footer
      %s20 = sadd.s32 1, %s16
    $region7: #{_block_forward_impl.2} parent=1 // loop_footer_branch
      %15 = sbr.rel target = $region3
    $region8: #{_block_forward_impl.2} parent=1 // loop_exit
      _
    %551 = vsyncpa [#allocation3], 1
    %s552 = scalar_lea.sflag [#allocation3], 1
    %553 = vsyncpa %s552, 1
    %554 = vsyncpa [#allocation5], 1

// kernel: _block_forward_impl.3
$region0: #{_block_forward_impl.3}
  #allocation0 [shape = 'u32[]', space=smem, size = 0x4, offset = 0x4, fixed_abs, tag = 'smem constant byte address 0x4 - core index']
  #allocation1 [shape = 'u32[144,128]{1,0:T(1,128)}', space=vmem, size = 0x12000, scoped, tag = 'internal scratch']
  #allocation2 [shape = 'bf16[4,8,8]{2,1,0:T(8,128)(2,1)}', space=vmem, size = 0x2000, scoped, tag = 'scratch operand']
  #allocation3 [shape = 'bf16[4,8,8]{2,1,0:T(8,128)(2,1)}', space=vmem, size = 0x2000, scoped, tag = 'scratch operand']
  #allocation4 [shape = 'bf16[4,8,8]{2,1,0:T(8,128)(2,1)}', space=vmem, size = 0x2000, scoped, tag = 'scratch operand']
  #allocation5 [shape = 'f32[4,8,8]{2,1,0:T(8,128)}', space=vmem, size = 0x4000, scoped, tag = 'scratch operand']
  %s0 = inlined_call_operand.vmem [shape: f32[2,8,32], index: 0, kind: input, shape index: {}]
  %s1 = inlined_call_operand.vmem [shape: bf16[2,8,32], index: 1, kind: input, shape index: {}]
  %s2 = inlined_call_operand.vmem [shape: bf16[2,8,32], index: 2, kind: input, shape index: {}]
  %s3 = inlined_call_operand.vmem [shape: bf16[2,8,32], index: 3, kind: input, shape index: {}]
  %s4 = inlined_call_operand.vmem [shape: bf16[32,32], index: 4, kind: input, shape index: {}]
  %s5 = inlined_call_operand.vmem [shape: f32[1,32], index: 5, kind: input, shape index: {}]
  %s6 = inlined_call_operand.vmem [shape: f32[1,32], index: 6, kind: input, shape index: {}]
  %s7 = inlined_call_operand.vmem [shape: f32[1,32], index: 7, kind: input, shape index: {}]
  %s8 = inlined_call_operand.vmem [shape: bf16[32,128], index: 8, kind: input, shape index: {}]
  %s9 = inlined_call_operand.vmem [shape: f32[1,128], index: 9, kind: input, shape index: {}]
  %s10 = inlined_call_operand.vmem [shape: bf16[128,32], index: 10, kind: input, shape index: {}]
  %s11 = inlined_call_operand.vmem [shape: f32[1,32], index: 11, kind: input, shape index: {}]
  %s12 = inlined_call_operand.hbm [shape: f32[2,8,32], index: 12, kind: output, shape index: {}]
  %s13 = sld [smem:[#allocation0]]
  $region88: #{_block_forward_impl.3} parent=0
    _
  %s15 = ssub.s32 1, %s13
  %s16 = scalar_select 0, %s15, %s13
  $region1: #{_block_forward_impl.3} parent=0
    #allocation6 [shape = 'u8[8192]{0}', space=vmem, size = 0x2000, scoped, tag = 'output window, operand 0']
    #allocation7 [shape = 's32[2]{0}', space=sflag, size = 0x8, scoped, tag = 'scoped memory for _block_forward_impl.3']
    %17 = vsyncpa [#allocation7], 0
    %s18 = scalar_lea.sflag [#allocation7], 1
    %19 = vsyncpa %s18, 0
    loop: start=0, step=1, limit=4
    $region2: #{_block_forward_impl.3} parent=1 // loop_pre_header
      _
    $region3: #{_block_forward_impl.3} parent=1 // loop_header
      %s21 = sphi 0, %s25
      %p22 = scmp.ge.s32.totalorder %s21, 4
      %s28 = sphi 0, %s40
      %s29 = sphi 0, %s36
      %s30 = sphi 0, %s28
      %s31 = sphi 0, %s29
      %s32 = sphi 0, %s30
      %s33 = sphi 0, %s31
      %s45 = sphi 0, %s47
      %s48 = sphi 0, %s45
      %s49 = sphi 0, %s48
      %s65 = sphi 0, %s49
      %s73 = sphi 0, %s75
      %s76 = sphi 0, %s73
      %s77 = sphi 0, %s76
      %s93 = sphi 0, %s77
      %s99 = sphi 0, %s101
      %s102 = sphi 0, %s99
      %s103 = sphi 0, %s102
      %s119 = sphi 0, %s103
      %s125 = sphi 0, %s127
      %s128 = sphi 0, %s125
      %s129 = sphi 0, %s128
      %s145 = sphi 0, %s129
      %s149 = sphi 0, %s149
      %s151 = sphi 0, %s149
      %s152 = sphi 0, %s151
      %s166 = sphi 0, %s152
      %s170 = sphi 0, %s170
      %s172 = sphi 0, %s170
      %s173 = sphi 0, %s172
      %s187 = sphi 0, %s173
      %s191 = sphi 0, %s191
      %s193 = sphi 0, %s191
      %s194 = sphi 0, %s193
      %s208 = sphi 0, %s194
      %s212 = sphi 0, %s212
      %s214 = sphi 0, %s212
      %s215 = sphi 0, %s214
      %s229 = sphi 0, %s215
      %s233 = sphi 0, %s233
      %s235 = sphi 0, %s233
      %s236 = sphi 0, %s235
      %s250 = sphi 0, %s236
      %s254 = sphi 0, %s254
      %s256 = sphi 0, %s254
      %s257 = sphi 0, %s256
      %s271 = sphi 0, %s257
      %s275 = sphi 0, %s275
      %s277 = sphi 0, %s275
      %s278 = sphi 0, %s277
      %s292 = sphi 0, %s278
      %s296 = sphi 0, %s296
      %s298 = sphi 0, %s296
      %s299 = sphi 0, %s298
      %s313 = sphi 0, %s299
      %s321 = sphi 0, %s323
      %s324 = sphi 0, %s321
      %s325 = sphi 0, %s324
      %s341 = sphi 0, %s325
    $region4: #{_block_forward_impl.3} parent=1 // loop_header_branch
      %24 = sbr.rel (%p22) target = $region8
    $region5: #{_block_forward_impl.3} parent=1 // loop_body
      %s26 = ssub.s32 %s21, 1
      %s27 = ssub.s32 %s21, 2
      %s34 = sadd.s32 1, %s29
      %p35 = scmp.ge.s32.totalorder %s34, 1
      %s36 = scalar_select %p35, 0, %s34
      %s37 = sadd.s32 1, %s28
      %s38 = scalar_select %p35, %s37, %s28
      %p39 = scmp.ge.s32.totalorder %s38, 2
      %s40 = scalar_select %p39, 0, %s38
      %s41 = ssub.s32 %s28, %s40
      %s42 = ssub.s32 %s29, %s36
      %s43 = sor.u32 %s41, %s42
      %p44 = scmp.eq.s32.totalorder %s43, 0
      %s46 = sadd.s32 %s45, 1
      %s47 = scalar_select %p44, %s45, %s46
      %p50 = pneg %p44
      %p51 = scmp.eq.s32.totalorder %s21, 1
      %p52 = por %p50, %p51
      %p53 = scmp.ne.s32.totalorder %s45, %s48
      %p54 = scmp.eq.s32.totalorder %s21, 0
      %p55 = por %p53, %p54
      %p56 = scmp.ne.s32.totalorder %s45, %s48
      %p57 = scmp.eq.s32.totalorder %s26, 1
      %p58 = por %p56, %p57
      %p59 = scmp.ne.s32.totalorder %s48, %s49
      %p60 = scmp.eq.s32.totalorder %s26, 0
      %p61 = por %p59, %p60
      %p62 = scmp.ne.s32.totalorder %s48, %s49
      %p63 = scmp.eq.s32.totalorder %s27, 1
      %p64 = por %p62, %p63
      %p66 = scmp.ne.s32.totalorder %s49, %s65
      %p67 = scmp.eq.s32.totalorder %s27, 0
      %p68 = por %p66, %p67
      %s69 = ssub.s32 %s28, %s40
      %s70 = ssub.s32 %s29, %s36
      %s71 = sor.u32 %s69, %s70
      %p72 = scmp.eq.s32.totalorder %s71, 0
      %s74 = sadd.s32 %s73, 1
      %s75 = scalar_select %p72, %s73, %s74
      %p78 = pneg %p72
      %p79 = scmp.eq.s32.totalorder %s21, 1
      %p80 = por %p78, %p79
      %p81 = scmp.ne.s32.totalorder %s73, %s76
      %p82 = scmp.eq.s32.totalorder %s21, 0
      %p83 = por %p81, %p82
      %p84 = scmp.ne.s32.totalorder %s73, %s76
      %p85 = scmp.eq.s32.totalorder %s26, 1
      %p86 = por %p84, %p85
      %p87 = scmp.ne.s32.totalorder %s76, %s77
      %p88 = scmp.eq.s32.totalorder %s26, 0
      %p89 = por %p87, %p88
      %p90 = scmp.ne.s32.totalorder %s76, %s77
      %p91 = scmp.eq.s32.totalorder %s27, 1
      %p92 = por %p90, %p91
      %p94 = scmp.ne.s32.totalorder %s77, %s93
      %p95 = scmp.eq.s32.totalorder %s27, 0
      %p96 = por %p94, %p95
      %s97 = ssub.s32 %s28, %s40
      %p98 = scmp.eq.s32.totalorder %s97, 0
      %s100 = sadd.s32 %s99, 1
      %s101 = scalar_select %p98, %s99, %s100
      %p104 = pneg %p98
      %p105 = scmp.eq.s32.totalorder %s21, 1
      %p106 = por %p104, %p105
      %p107 = scmp.ne.s32.totalorder %s99, %s102
      %p108 = scmp.eq.s32.totalorder %s21, 0
      %p109 = por %p107, %p108
      %p110 = scmp.ne.s32.totalorder %s99, %s102
      %p111 = scmp.eq.s32.totalorder %s26, 1
      %p112 = por %p110, %p111
      %p113 = scmp.ne.s32.totalorder %s102, %s103
      %p114 = scmp.eq.s32.totalorder %s26, 0
      %p115 = por %p113, %p114
      %p116 = scmp.ne.s32.totalorder %s102, %s103
      %p117 = scmp.eq.s32.totalorder %s27, 1
      %p118 = por %p116, %p117
      %p120 = scmp.ne.s32.totalorder %s103, %s119
      %p121 = scmp.eq.s32.totalorder %s27, 0
      %p122 = por %p120, %p121
      %s123 = ssub.s32 %s28, %s40
      %p124 = scmp.eq.s32.totalorder %s123, 0
      %s126 = sadd.s32 %s125, 1
      %s127 = scalar_select %p124, %s125, %s126
      %p130 = pneg %p124
      %p131 = scmp.eq.s32.totalorder %s21, 1
      %p132 = por %p130, %p131
      %p133 = scmp.ne.s32.totalorder %s125, %s128
      %p134 = scmp.eq.s32.totalorder %s21, 0
      %p135 = por %p133, %p134
      %p136 = scmp.ne.s32.totalorder %s125, %s128
      %p137 = scmp.eq.s32.totalorder %s26, 1
      %p138 = por %p136, %p137
      %p139 = scmp.ne.s32.totalorder %s128, %s129
      %p140 = scmp.eq.s32.totalorder %s26, 0
      %p141 = por %p139, %p140
      %p142 = scmp.ne.s32.totalorder %s128, %s129
      %p143 = scmp.eq.s32.totalorder %s27, 1
      %p144 = por %p142, %p143
      %p146 = scmp.ne.s32.totalorder %s129, %s145
      %p147 = scmp.eq.s32.totalorder %s27, 0
      %p148 = por %p146, %p147
      %s150 = sadd.s32 %s149, 1
      %p153 = scmp.eq.s32.totalorder %s21, 1
      %p154 = scmp.ne.s32.totalorder %s149, %s151
      %p155 = scmp.eq.s32.totalorder %s21, 0
      %p156 = por %p154, %p155
      %p157 = scmp.ne.s32.totalorder %s149, %s151
      %p158 = scmp.eq.s32.totalorder %s26, 1
      %p159 = por %p157, %p158
      %p160 = scmp.ne.s32.totalorder %s151, %s152
      %p161 = scmp.eq.s32.totalorder %s26, 0
      %p162 = por %p160, %p161
      %p163 = scmp.ne.s32.totalorder %s151, %s152
      %p164 = scmp.eq.s32.totalorder %s27, 1
      %p165 = por %p163, %p164
      %p167 = scmp.ne.s32.totalorder %s152, %s166
      %p168 = scmp.eq.s32.totalorder %s27, 0
      %p169 = por %p167, %p168
      %s171 = sadd.s32 %s170, 1
      %p174 = scmp.eq.s32.totalorder %s21, 1
      %p175 = scmp.ne.s32.totalorder %s170, %s172
      %p176 = scmp.eq.s32.totalorder %s21, 0
      %p177 = por %p175, %p176
      %p178 = scmp.ne.s32.totalorder %s170, %s172
      %p179 = scmp.eq.s32.totalorder %s26, 1
      %p180 = por %p178, %p179
      %p181 = scmp.ne.s32.totalorder %s172, %s173
      %p182 = scmp.eq.s32.totalorder %s26, 0
      %p183 = por %p181, %p182
      %p184 = scmp.ne.s32.totalorder %s172, %s173
      %p185 = scmp.eq.s32.totalorder %s27, 1
      %p186 = por %p184, %p185
      %p188 = scmp.ne.s32.totalorder %s173, %s187
      %p189 = scmp.eq.s32.totalorder %s27, 0
      %p190 = por %p188, %p189
      %s192 = sadd.s32 %s191, 1
      %p195 = scmp.eq.s32.totalorder %s21, 1
      %p196 = scmp.ne.s32.totalorder %s191, %s193
      %p197 = scmp.eq.s32.totalorder %s21, 0
      %p198 = por %p196, %p197
      %p199 = scmp.ne.s32.totalorder %s191, %s193
      %p200 = scmp.eq.s32.totalorder %s26, 1
      %p201 = por %p199, %p200
      %p202 = scmp.ne.s32.totalorder %s193, %s194
      %p203 = scmp.eq.s32.totalorder %s26, 0
      %p204 = por %p202, %p203
      %p205 = scmp.ne.s32.totalorder %s193, %s194
      %p206 = scmp.eq.s32.totalorder %s27, 1
      %p207 = por %p205, %p206
      %p209 = scmp.ne.s32.totalorder %s194, %s208
      %p210 = scmp.eq.s32.totalorder %s27, 0
      %p211 = por %p209, %p210
      %s213 = sadd.s32 %s212, 1
      %p216 = scmp.eq.s32.totalorder %s21, 1
      %p217 = scmp.ne.s32.totalorder %s212, %s214
      %p218 = scmp.eq.s32.totalorder %s21, 0
      %p219 = por %p217, %p218
      %p220 = scmp.ne.s32.totalorder %s212, %s214
      %p221 = scmp.eq.s32.totalorder %s26, 1
      %p222 = por %p220, %p221
      %p223 = scmp.ne.s32.totalorder %s214, %s215
      %p224 = scmp.eq.s32.totalorder %s26, 0
      %p225 = por %p223, %p224
      %p226 = scmp.ne.s32.totalorder %s214, %s215
      %p227 = scmp.eq.s32.totalorder %s27, 1
      %p228 = por %p226, %p227
      %p230 = scmp.ne.s32.totalorder %s215, %s229
      %p231 = scmp.eq.s32.totalorder %s27, 0
      %p232 = por %p230, %p231
      %s234 = sadd.s32 %s233, 1
      %p237 = scmp.eq.s32.totalorder %s21, 1
      %p238 = scmp.ne.s32.totalorder %s233, %s235
      %p239 = scmp.eq.s32.totalorder %s21, 0
      %p240 = por %p238, %p239
      %p241 = scmp.ne.s32.totalorder %s233, %s235
      %p242 = scmp.eq.s32.totalorder %s26, 1
      %p243 = por %p241, %p242
      %p244 = scmp.ne.s32.totalorder %s235, %s236
      %p245 = scmp.eq.s32.totalorder %s26, 0
      %p246 = por %p244, %p245
      %p247 = scmp.ne.s32.totalorder %s235, %s236
      %p248 = scmp.eq.s32.totalorder %s27, 1
      %p249 = por %p247, %p248
      %p251 = scmp.ne.s32.totalorder %s236, %s250
      %p252 = scmp.eq.s32.totalorder %s27, 0
      %p253 = por %p251, %p252
      %s255 = sadd.s32 %s254, 1
      %p258 = scmp.eq.s32.totalorder %s21, 1
      %p259 = scmp.ne.s32.totalorder %s254, %s256
      %p260 = scmp.eq.s32.totalorder %s21, 0
      %p261 = por %p259, %p260
      %p262 = scmp.ne.s32.totalorder %s254, %s256
      %p263 = scmp.eq.s32.totalorder %s26, 1
      %p264 = por %p262, %p263
      %p265 = scmp.ne.s32.totalorder %s256, %s257
      %p266 = scmp.eq.s32.totalorder %s26, 0
      %p267 = por %p265, %p266
      %p268 = scmp.ne.s32.totalorder %s256, %s257
      %p269 = scmp.eq.s32.totalorder %s27, 1
      %p270 = por %p268, %p269
      %p272 = scmp.ne.s32.totalorder %s257, %s271
      %p273 = scmp.eq.s32.totalorder %s27, 0
      %p274 = por %p272, %p273
      %s276 = sadd.s32 %s275, 1
      %p279 = scmp.eq.s32.totalorder %s21, 1
      %p280 = scmp.ne.s32.totalorder %s275, %s277
      %p281 = scmp.eq.s32.totalorder %s21, 0
      %p282 = por %p280, %p281
      %p283 = scmp.ne.s32.totalorder %s275, %s277
      %p284 = scmp.eq.s32.totalorder %s26, 1
      %p285 = por %p283, %p284
      %p286 = scmp.ne.s32.totalorder %s277, %s278
      %p287 = scmp.eq.s32.totalorder %s26, 0
      %p288 = por %p286, %p287
      %p289 = scmp.ne.s32.totalorder %s277, %s278
      %p290 = scmp.eq.s32.totalorder %s27, 1
      %p291 = por %p289, %p290
      %p293 = scmp.ne.s32.totalorder %s278, %s292
      %p294 = scmp.eq.s32.totalorder %s27, 0
      %p295 = por %p293, %p294
      %s297 = sadd.s32 %s296, 1
      %p300 = scmp.eq.s32.totalorder %s21, 1
      %p301 = scmp.ne.s32.totalorder %s296, %s298
      %p302 = scmp.eq.s32.totalorder %s21, 0
      %p303 = por %p301, %p302
      %p304 = scmp.ne.s32.totalorder %s296, %s298
      %p305 = scmp.eq.s32.totalorder %s26, 1
      %p306 = por %p304, %p305
      %p307 = scmp.ne.s32.totalorder %s298, %s299
      %p308 = scmp.eq.s32.totalorder %s26, 0
      %p309 = por %p307, %p308
      %p310 = scmp.ne.s32.totalorder %s298, %s299
      %p311 = scmp.eq.s32.totalorder %s27, 1
      %p312 = por %p310, %p311
      %p314 = scmp.ne.s32.totalorder %s299, %s313
      %p315 = scmp.eq.s32.totalorder %s27, 0
      %p316 = por %p314, %p315
      %s317 = ssub.s32 %s28, %s40
      %s318 = ssub.s32 %s29, %s36
      %s319 = sor.u32 %s317, %s318
      %p320 = scmp.eq.s32.totalorder %s319, 0
      %s322 = sadd.s32 %s321, 1
      %s323 = scalar_select %p320, %s321, %s322
      %p326 = pneg %p320
      %p327 = scmp.eq.s32.totalorder %s21, 1
      %p328 = por %p326, %p327
      %p329 = scmp.ne.s32.totalorder %s321, %s324
      %p330 = scmp.eq.s32.totalorder %s21, 0
      %p331 = por %p329, %p330
      %p332 = scmp.ne.s32.totalorder %s321, %s324
      %p333 = scmp.eq.s32.totalorder %s26, 1
      %p334 = por %p332, %p333
      %p335 = scmp.ne.s32.totalorder %s324, %s325
      %p336 = scmp.eq.s32.totalorder %s26, 0
      %p337 = por %p335, %p336
      %p338 = scmp.ne.s32.totalorder %s324, %s325
      %p339 = scmp.eq.s32.totalorder %s27, 1
      %p340 = por %p338, %p339
      %p342 = scmp.ne.s32.totalorder %s325, %s341
      %p343 = scmp.eq.s32.totalorder %s27, 0
      %p344 = por %p342, %p343
      %p345 = scmp.le.s32.totalorder 1, %s21
      %p346 = scmp.lt.s32.totalorder %s21, 3
      %p347 = pnand %p345, %p346
      %p348 = pneg %p347
      // Predicated region
      $region9: #{_block_forward_impl.3} parent=5 // pred_check
        _
      $region10: #{_block_forward_impl.3} parent=5 // pred_check_branch
        %350 = sbr.rel (%p347) target = $region12
      $region11: #{_block_forward_impl.3} parent=5 // pred_region
        %s351 = ssub.s32 %s21, 1
        // Predicated region
        $region13: #{_block_forward_impl.3} parent=11 // pred_check
          %p352 = pneg %p162
        $region14: #{_block_forward_impl.3} parent=11 // pred_check_branch
          %354 = sbr.rel (%p352) target = $region16
        $region15: #{_block_forward_impl.3} parent=11 // pred_region
          _
        $region16: #{_block_forward_impl.3} parent=11 // pred_fallthru
          _
        // Predicated region
        $region17: #{_block_forward_impl.3} parent=11 // pred_check
          %p355 = pneg %p183
        $region18: #{_block_forward_impl.3} parent=11 // pred_check_branch
          %357 = sbr.rel (%p355) target = $region20
        $region19: #{_block_forward_impl.3} parent=11 // pred_region
          _
        $region20: #{_block_forward_impl.3} parent=11 // pred_fallthru
          _
        // Predicated region
        $region21: #{_block_forward_impl.3} parent=11 // pred_check
          %p358 = pneg %p204
        $region22: #{_block_forward_impl.3} parent=11 // pred_check_branch
          %360 = sbr.rel (%p358) target = $region24
        $region23: #{_block_forward_impl.3} parent=11 // pred_region
          _
        $region24: #{_block_forward_impl.3} parent=11 // pred_fallthru
          _
        // Predicated region
        $region25: #{_block_forward_impl.3} parent=11 // pred_check
          %p361 = pneg %p225
        $region26: #{_block_forward_impl.3} parent=11 // pred_check_branch
          %363 = sbr.rel (%p361) target = $region28
        $region27: #{_block_forward_impl.3} parent=11 // pred_region
          _
        $region28: #{_block_forward_impl.3} parent=11 // pred_fallthru
          _
        // Predicated region
        $region29: #{_block_forward_impl.3} parent=11 // pred_check
          %p364 = pneg %p246
        $region30: #{_block_forward_impl.3} parent=11 // pred_check_branch
          %366 = sbr.rel (%p364) target = $region32
        $region31: #{_block_forward_impl.3} parent=11 // pred_region
          _
        $region32: #{_block_forward_impl.3} parent=11 // pred_fallthru
          _
        // Predicated region
        $region33: #{_block_forward_impl.3} parent=11 // pred_check
          %p367 = pneg %p267
        $region34: #{_block_forward_impl.3} parent=11 // pred_check_branch
          %369 = sbr.rel (%p367) target = $region36
        $region35: #{_block_forward_impl.3} parent=11 // pred_region
          _
        $region36: #{_block_forward_impl.3} parent=11 // pred_fallthru
          _
        // Predicated region
        $region37: #{_block_forward_impl.3} parent=11 // pred_check
          %p370 = pneg %p288
        $region38: #{_block_forward_impl.3} parent=11 // pred_check_branch
          %372 = sbr.rel (%p370) target = $region40
        $region39: #{_block_forward_impl.3} parent=11 // pred_region
          _
        $region40: #{_block_forward_impl.3} parent=11 // pred_fallthru
          _
        // Predicated region
        $region41: #{_block_forward_impl.3} parent=11 // pred_check
          %p373 = pneg %p309
        $region42: #{_block_forward_impl.3} parent=11 // pred_check_branch
          %375 = sbr.rel (%p373) target = $region44
        $region43: #{_block_forward_impl.3} parent=11 // pred_region
          _
        $region44: #{_block_forward_impl.3} parent=11 // pred_fallthru
          _
      $region12: #{_block_forward_impl.3} parent=5 // pred_fallthru
        _
      %p376 = scmp.lt.s32.totalorder %s21, 2
      // Predicated region
      $region45: #{_block_forward_impl.3} parent=5 // pred_check
        %p377 = pneg %p376
      $region46: #{_block_forward_impl.3} parent=5 // pred_check_branch
        %379 = sbr.rel (%p377) target = $region48
      $region47: #{_block_forward_impl.3} parent=5 // pred_region
        // Predicated region
        $region49: #{_block_forward_impl.3} parent=47 // pred_check
          %p380 = pneg %p55
        $region50: #{_block_forward_impl.3} parent=47 // pred_check_branch
          %382 = sbr.rel (%p380) target = $region52
        $region51: #{_block_forward_impl.3} parent=47 // pred_region
          %p383 = scmp.lt.s32.totalorder %s28, 1
          %s384 = scalar_select %p383, %s28, 1
          %p385 = scmp.lt.s32.totalorder %s29, 0
          %s386 = scalar_select %p385, %s29, 0
          %s387 = sadd.s32 %s386, %s384
          %s388 = smul.addr %s387, 8
          %s389 = scalar_lea.vmem %s0, %s388
        $region52: #{_block_forward_impl.3} parent=47 // pred_fallthru
          _
        // Predicated region
        $region53: #{_block_forward_impl.3} parent=47 // pred_check
          %p390 = pneg %p83
        $region54: #{_block_forward_impl.3} parent=47 // pred_check_branch
          %392 = sbr.rel (%p390) target = $region56
        $region55: #{_block_forward_impl.3} parent=47 // pred_region
          %p393 = scmp.lt.s32.totalorder %s28, 1
          %s394 = scalar_select %p393, %s28, 1
          %p395 = scmp.lt.s32.totalorder %s29, 0
          %s396 = scalar_select %p395, %s29, 0
          %s397 = sadd.s32 %s396, %s394
          %s398 = smul.addr %s397, 4
          %s399 = scalar_lea.vmem %s1, %s398
        $region56: #{_block_forward_impl.3} parent=47 // pred_fallthru
          _
        // Predicated region
        $region57: #{_block_forward_impl.3} parent=47 // pred_check
          %p400 = pneg %p109
        $region58: #{_block_forward_impl.3} parent=47 // pred_check_branch
          %402 = sbr.rel (%p400) target = $region60
        $region59: #{_block_forward_impl.3} parent=47 // pred_region
          %p403 = scmp.lt.s32.totalorder %s28, 1
          %s404 = scalar_select %p403, %s28, 1
          %s405 = smul.addr %s404, 4
          %s406 = scalar_lea.vmem %s2, %s405
        $region60: #{_block_forward_impl.3} parent=47 // pred_fallthru
          _
        // Predicated region
        $region61: #{_block_forward_impl.3} parent=47 // pred_check
          %p407 = pneg %p135
        $region62: #{_block_forward_impl.3} parent=47 // pred_check_branch
          %409 = sbr.rel (%p407) target = $region64
        $region63: #{_block_forward_impl.3} parent=47 // pred_region
          %p410 = scmp.lt.s32.totalorder %s28, 1
          %s411 = scalar_select %p410, %s28, 1
          %s412 = smul.addr %s411, 4
          %s413 = scalar_lea.vmem %s3, %s412
        $region64: #{_block_forward_impl.3} parent=47 // pred_fallthru
          _
      $region48: #{_block_forward_impl.3} parent=5 // pred_fallthru
        _
      %p414 = scmp.le.s32.totalorder 1, %s21
      %p415 = scmp.lt.s32.totalorder %s21, 3
      %p416 = pnand %p414, %p415
      %p417 = pneg %p416
      // Predicated region
      $region65: #{_block_forward_impl.3} parent=5 // pred_check
        _
      $region66: #{_block_forward_impl.3} parent=5 // pred_check_branch
        %419 = sbr.rel (%p416) target = $region68
      $region67: #{_block_forward_impl.3} parent=5 // pred_region
        %s420 = ssub.s32 %s21, 1
        %p421 = scmp.lt.s32.totalorder %s30, 1
        %s422 = scalar_select %p421, %s30, 1
        %p423 = scmp.lt.s32.totalorder %s31, 0
        %s424 = scalar_select %p423, %s31, 0
        %s425 = sadd.s32 %s424, %s422
        %s426 = smul.addr %s425, 8
        %s427 = scalar_lea.vmem %s0, %s426
        %p428 = pneg %p61
        %p429 = pneg %p58
        %p430 = scmp.lt.s32.totalorder %s30, 1
        %s431 = scalar_select %p430, %s30, 1
        %p432 = scmp.lt.s32.totalorder %s31, 0
        %s433 = scalar_select %p432, %s31, 0
        %s434 = sadd.s32 %s433, %s431
        %s435 = smul.addr %s434, 4
        %s436 = scalar_lea.vmem %s1, %s435
        %p437 = pneg %p89
        %p438 = pneg %p86
        %p439 = scmp.lt.s32.totalorder %s30, 1
        %s440 = scalar_select %p439, %s30, 1
        %s441 = smul.addr %s440, 4
        %s442 = scalar_lea.vmem %s2, %s441
        %p443 = pneg %p115
        %p444 = pneg %p112
        %p445 = scmp.lt.s32.totalorder %s30, 1
        %s446 = scalar_select %p445, %s30, 1
        %s447 = smul.addr %s446, 4
        %s448 = scalar_lea.vmem %s3, %s447
        %p449 = pneg %p141
        %p450 = pneg %p138
        %p451 = pneg %p162
        %p452 = pneg %p159
        %p453 = pneg %p183
        %p454 = pneg %p180
        %p455 = pneg %p204
        %p456 = pneg %p201
        %p457 = pneg %p225
        %p458 = pneg %p222
        %p459 = pneg %p246
        %p460 = pneg %p243
        %p461 = pneg %p267
        %p462 = pneg %p264
        %p463 = pneg %p288
        %p464 = pneg %p285
        %p465 = pneg %p309
        %p466 = pneg %p306
        %p467 = pneg %p337
        %p468 = pneg %p334
        %s469 = sand.u32 %s324, 1
        %s470 = scalar_lea.sflag [#allocation7], %s469
        %s471 = sand.u32 %s324, 1
        %s472 = smul.addr %s471, 8
        %s473 = scalar_lea.vmem [#allocation6], %s472
        %p474 = scmp.lt.s32.totalorder %s30, 1
        %s475 = scalar_select %p474, %s30, 1
        %p476 = scmp.lt.s32.totalorder %s31, 0
        %s477 = scalar_select %p476, %s31, 0
        %s478 = sadd.s32 %s477, %s475
        %s479 = smul.addr %s478, 8
        %s480 = scalar_lea.vmem %s0, %s479
        %p481 = scmp.lt.s32.totalorder %s30, 1
        %s482 = scalar_select %p481, %s30, 1
        %p483 = scmp.lt.s32.totalorder %s31, 0
        %s484 = scalar_select %p483, %s31, 0
        %s485 = sadd.s32 %s484, %s482
        %s486 = smul.addr %s485, 4
        %s487 = scalar_lea.vmem %s1, %s486
        %p488 = scmp.lt.s32.totalorder %s30, 1
        %s489 = scalar_select %p488, %s30, 1
        %s490 = smul.addr %s489, 4
        %s491 = scalar_lea.vmem %s2, %s490
        %p492 = scmp.lt.s32.totalorder %s30, 1
        %s493 = scalar_select %p492, %s30, 1
        %s494 = smul.addr %s493, 4
        %s495 = scalar_lea.vmem %s3, %s494
        %v497 = vld [vmem:[%s480] sm:$0xff]
        %v498 = vld [vmem:[%s487] sm:$0xf]
        %500 = vrot.lane.b32.xlu0 %v498, 120
        %v501 = vpop.permute.xlu0 %500
        %502 = vrot.lane.b32.xlu0 %v498, 112
        %v503 = vpop.permute.xlu0 %502
        %504 = vrot.lane.b32.xlu0 %v498, 104
        %v505 = vpop.permute.xlu0 %504
        %v508 = vpack.i.b16 %v501, %v498
        %v509 = vshrl.u32 %v498, 16
        %v510 = vshrl.u32 %v501, 16
        %v511 = vpack.i.b16 %v510, %v509
        %v514 = vpack.i.b16 %v505, %v503
        %v515 = vshrl.u32 %v503, 16
        %v516 = vshrl.u32 %v505, 16
        %v517 = vpack.i.b16 %v516, %v515
        %v520 = vunpack.c.l.s4 1983009808
        %v521 = vunpack.c.0.s8 %v520
        %v522 = vlaneseq
        %v523 = vshrl.u32 %v522, 7
        %v524 = vsub.s32 %v521, %v523
        %v525 = vrot.slane %v508, %v524
        %v528 = vunpack.c.l.s4 1983009808
        %v529 = vunpack.c.0.s8 %v528
        %v530 = vlaneseq
        %v531 = vshrl.u32 %v530, 7
        %v532 = vsub.s32 %v529, %v531
        %v533 = vrot.slane %v514, %v532
        %v534 = vcombine.low %v525, %v533
        %v535 = vcombine.high %v525, %v533
        %v537 = vunpack.c.l.s4 1934713408
        %v538 = vunpack.c.0.s8 %v537
        %v539 = vlaneseq
        %v540 = vshrl.u32 %v539, 7
        %v541 = vsub.s32 %v538, %v540
        %v542 = vrot.slane %v534, %v541
        %v544 = vunpack.c.l.s4 1934713408
        %v545 = vunpack.c.0.s8 %v544
        %v546 = vlaneseq
        %v547 = vshrl.u32 %v546, 7
        %v548 = vsub.s32 %v545, %v547
        %v549 = vrot.slane %v535, %v548
        %v550 = vcombine.high %v542, 0
        %v551 = vcombine.high %v549, 0
        %v554 = vunpack.c.l.s4 1983009808
        %v555 = vunpack.c.0.s8 %v554
        %v556 = vlaneseq
        %v557 = vshrl.u32 %v556, 7
        %v558 = vsub.s32 %v555, %v557
        %v559 = vrot.slane %v511, %v558
        %v562 = vunpack.c.l.s4 1983009808
        %v563 = vunpack.c.0.s8 %v562
        %v564 = vlaneseq
        %v565 = vshrl.u32 %v564, 7
        %v566 = vsub.s32 %v563, %v565
        %v567 = vrot.slane %v517, %v566
        %v568 = vcombine.low %v559, %v567
        %v569 = vcombine.high %v559, %v567
        %v571 = vunpack.c.l.s4 1934713408
        %v572 = vunpack.c.0.s8 %v571
        %v573 = vlaneseq
        %v574 = vshrl.u32 %v573, 7
        %v575 = vsub.s32 %v572, %v574
        %v576 = vrot.slane %v568, %v575
        %v578 = vunpack.c.l.s4 1934713408
        %v579 = vunpack.c.0.s8 %v578
        %v580 = vlaneseq
        %v581 = vshrl.u32 %v580, 7
        %v582 = vsub.s32 %v579, %v581
        %v583 = vrot.slane %v569, %v582
        %v584 = vcombine.high %v576, 0
        %v585 = vcombine.high %v583, 0
        %v586 = vcombine.low %v542, %v549
        %v588 = vunpack.c.l.s4 1983009808
        %v589 = vunpack.c.0.s8 %v588
        %v590 = vlaneseq
        %v591 = vshrl.u32 %v590, 7
        %v592 = vsub.s32 %v589, %v591
        %v593 = vrot.slane %v586, %v592
        %v594 = vcombine.low %v550, %v551
        %v596 = vunpack.c.l.s4 1983009808
        %v597 = vunpack.c.0.s8 %v596
        %v598 = vlaneseq
        %v599 = vshrl.u32 %v598, 7
        %v600 = vsub.s32 %v597, %v599
        %v601 = vrot.slane %v594, %v600
        %v602 = vcombine.low %v593, %v601
        %v604 = vunpack.c.l.s4 1934713408
        %v605 = vunpack.c.0.s8 %v604
        %v606 = vlaneseq
        %v607 = vshrl.u32 %v606, 7
        %v608 = vsub.s32 %v605, %v607
        %v609 = vrot.slane %v602, %v608
        %v610 = vcombine.high %v609, 0
        %v611 = vcombine.low %v576, %v583
        %v613 = vunpack.c.l.s4 1983009808
        %v614 = vunpack.c.0.s8 %v613
        %v615 = vlaneseq
        %v616 = vshrl.u32 %v615, 7
        %v617 = vsub.s32 %v614, %v616
        %v618 = vrot.slane %v611, %v617
        %v619 = vcombine.low %v584, %v585
        %v621 = vunpack.c.l.s4 1983009808
        %v622 = vunpack.c.0.s8 %v621
        %v623 = vlaneseq
        %v624 = vshrl.u32 %v623, 7
        %v625 = vsub.s32 %v622, %v624
        %v626 = vrot.slane %v619, %v625
        %v627 = vcombine.low %v618, %v626
        %v629 = vunpack.c.l.s4 1934713408
        %v630 = vunpack.c.0.s8 %v629
        %v631 = vlaneseq
        %v632 = vshrl.u32 %v631, 7
        %v633 = vsub.s32 %v630, %v632
        %v634 = vrot.slane %v627, %v633
        %v635 = vcombine.high %v634, 0
        %v638 = vpack.i.b16 %v634, %v609
        %v640 = vshrl.u32 %v609, 16
        %v641 = vshrl.u32 %v634, 16
        %v642 = vpack.i.b16 %v641, %v640
        %v646 = vpack.i.b16 %v635, %v610
        %v648 = vshrl.u32 %v610, 16
        %v649 = vshrl.u32 %v635, 16
        %v650 = vpack.i.b16 %v649, %v648
        %vm652 = vcmask 60416
        %653 = vst.msk [vmem:[#allocation2] sm:$0xf] %vm652, %v638
        %654 = vst.msk [vmem:[#allocation2 + $0x4] sm:$0xf] %vm652, %v642
        %655 = vst.msk [vmem:[#allocation2 + $0x8] sm:$0xf] %vm652, %v646
        %656 = vst.msk [vmem:[#allocation2 + $0xc] sm:$0xf] %vm652, %v650
        %v657 = vld [vmem:[%s491] sm:$0xf]
        %659 = vrot.lane.b32.xlu0 %v657, 120
        %v660 = vpop.permute.xlu0 %659
        %661 = vrot.lane.b32.xlu0 %v657, 112
        %v662 = vpop.permute.xlu0 %661
        %663 = vrot.lane.b32.xlu0 %v657, 104
        %v664 = vpop.permute.xlu0 %663
        %v667 = vpack.i.b16 %v660, %v657
        %v668 = vshrl.u32 %v657, 16
        %v669 = vshrl.u32 %v660, 16
        %v670 = vpack.i.b16 %v669, %v668
        %v673 = vpack.i.b16 %v664, %v662
        %v674 = vshrl.u32 %v662, 16
        %v675 = vshrl.u32 %v664, 16
        %v676 = vpack.i.b16 %v675, %v674
        %v679 = vunpack.c.l.s4 1983009808
        %v680 = vunpack.c.0.s8 %v679
        %v681 = vlaneseq
        %v682 = vshrl.u32 %v681, 7
        %v683 = vsub.s32 %v680, %v682
        %v684 = vrot.slane %v667, %v683
        %v687 = vunpack.c.l.s4 1983009808
        %v688 = vunpack.c.0.s8 %v687
        %v689 = vlaneseq
        %v690 = vshrl.u32 %v689, 7
        %v691 = vsub.s32 %v688, %v690
        %v692 = vrot.slane %v673, %v691
        %v693 = vcombine.low %v684, %v692
        %v694 = vcombine.high %v684, %v692
        %v696 = vunpack.c.l.s4 1934713408
        %v697 = vunpack.c.0.s8 %v696
        %v698 = vlaneseq
        %v699 = vshrl.u32 %v698, 7
        %v700 = vsub.s32 %v697, %v699
        %v701 = vrot.slane %v693, %v700
        %v703 = vunpack.c.l.s4 1934713408
        %v704 = vunpack.c.0.s8 %v703
        %v705 = vlaneseq
        %v706 = vshrl.u32 %v705, 7
        %v707 = vsub.s32 %v704, %v706
        %v708 = vrot.slane %v694, %v707
        %v709 = vcombine.high %v701, 0
        %v710 = vcombine.high %v708, 0
        %v713 = vunpack.c.l.s4 1983009808
        %v714 = vunpack.c.0.s8 %v713
        %v715 = vlaneseq
        %v716 = vshrl.u32 %v715, 7
        %v717 = vsub.s32 %v714, %v716
        %v718 = vrot.slane %v670, %v717
        %v721 = vunpack.c.l.s4 1983009808
        %v722 = vunpack.c.0.s8 %v721
        %v723 = vlaneseq
        %v724 = vshrl.u32 %v723, 7
        %v725 = vsub.s32 %v722, %v724
        %v726 = vrot.slane %v676, %v725
        %v727 = vcombine.low %v718, %v726
        %v728 = vcombine.high %v718, %v726
        %v730 = vunpack.c.l.s4 1934713408
        %v731 = vunpack.c.0.s8 %v730
        %v732 = vlaneseq
        %v733 = vshrl.u32 %v732, 7
        %v734 = vsub.s32 %v731, %v733
        %v735 = vrot.slane %v727, %v734
        %v737 = vunpack.c.l.s4 1934713408
        %v738 = vunpack.c.0.s8 %v737
        %v739 = vlaneseq
        %v740 = vshrl.u32 %v739, 7
        %v741 = vsub.s32 %v738, %v740
        %v742 = vrot.slane %v728, %v741
        %v743 = vcombine.high %v735, 0
        %v744 = vcombine.high %v742, 0
        %v745 = vcombine.low %v701, %v708
        %v747 = vunpack.c.l.s4 1983009808
        %v748 = vunpack.c.0.s8 %v747
        %v749 = vlaneseq
        %v750 = vshrl.u32 %v749, 7
        %v751 = vsub.s32 %v748, %v750
        %v752 = vrot.slane %v745, %v751
        %v753 = vcombine.low %v709, %v710
        %v755 = vunpack.c.l.s4 1983009808
        %v756 = vunpack.c.0.s8 %v755
        %v757 = vlaneseq
        %v758 = vshrl.u32 %v757, 7
        %v759 = vsub.s32 %v756, %v758
        %v760 = vrot.slane %v753, %v759
        %v761 = vcombine.low %v752, %v760
        %v763 = vunpack.c.l.s4 1934713408
        %v764 = vunpack.c.0.s8 %v763
        %v765 = vlaneseq
        %v766 = vshrl.u32 %v765, 7
        %v767 = vsub.s32 %v764, %v766
        %v768 = vrot.slane %v761, %v767
        %v769 = vcombine.high %v768, 0
        %v770 = vcombine.low %v735, %v742
        %v772 = vunpack.c.l.s4 1983009808
        %v773 = vunpack.c.0.s8 %v772
        %v774 = vlaneseq
        %v775 = vshrl.u32 %v774, 7
        %v776 = vsub.s32 %v773, %v775
        %v777 = vrot.slane %v770, %v776
        %v778 = vcombine.low %v743, %v744
        %v780 = vunpack.c.l.s4 1983009808
        %v781 = vunpack.c.0.s8 %v780
        %v782 = vlaneseq
        %v783 = vshrl.u32 %v782, 7
        %v784 = vsub.s32 %v781, %v783
        %v785 = vrot.slane %v778, %v784
        %v786 = vcombine.low %v777, %v785
        %v788 = vunpack.c.l.s4 1934713408
        %v789 = vunpack.c.0.s8 %v788
        %v790 = vlaneseq
        %v791 = vshrl.u32 %v790, 7
        %v792 = vsub.s32 %v789, %v791
        %v793 = vrot.slane %v786, %v792
        %v794 = vcombine.high %v793, 0
        %v797 = vpack.i.b16 %v793, %v768
        %v799 = vshrl.u32 %v768, 16
        %v800 = vshrl.u32 %v793, 16
        %v801 = vpack.i.b16 %v800, %v799
        %v805 = vpack.i.b16 %v794, %v769
        %v807 = vshrl.u32 %v769, 16
        %v808 = vshrl.u32 %v794, 16
        %v809 = vpack.i.b16 %v808, %v807
        %811 = vst.msk [vmem:[#allocation3] sm:$0xf] %vm652, %v797
        %812 = vst.msk [vmem:[#allocation3 + $0x4] sm:$0xf] %vm652, %v801
        %813 = vst.msk [vmem:[#allocation3 + $0x8] sm:$0xf] %vm652, %v805
        %814 = vst.msk [vmem:[#allocation3 + $0xc] sm:$0xf] %vm652, %v809
        %v815 = vld [vmem:[%s495] sm:$0xf]
        %817 = vrot.lane.b32.xlu0 %v815, 120
        %v818 = vpop.permute.xlu0 %817
        %819 = vrot.lane.b32.xlu0 %v815, 112
        %v820 = vpop.permute.xlu0 %819
        %821 = vrot.lane.b32.xlu0 %v815, 104
        %v822 = vpop.permute.xlu0 %821
        %v825 = vpack.i.b16 %v818, %v815
        %v826 = vshrl.u32 %v815, 16
        %v827 = vshrl.u32 %v818, 16
        %v828 = vpack.i.b16 %v827, %v826
        %v831 = vpack.i.b16 %v822, %v820
        %v832 = vshrl.u32 %v820, 16
        %v833 = vshrl.u32 %v822, 16
        %v834 = vpack.i.b16 %v833, %v832
        %v837 = vunpack.c.l.s4 1983009808
        %v838 = vunpack.c.0.s8 %v837
        %v839 = vlaneseq
        %v840 = vshrl.u32 %v839, 7
        %v841 = vsub.s32 %v838, %v840
        %v842 = vrot.slane %v825, %v841
        %v845 = vunpack.c.l.s4 1983009808
        %v846 = vunpack.c.0.s8 %v845
        %v847 = vlaneseq
        %v848 = vshrl.u32 %v847, 7
        %v849 = vsub.s32 %v846, %v848
        %v850 = vrot.slane %v831, %v849
        %v851 = vcombine.low %v842, %v850
        %v852 = vcombine.high %v842, %v850
        %v854 = vunpack.c.l.s4 1934713408
        %v855 = vunpack.c.0.s8 %v854
        %v856 = vlaneseq
        %v857 = vshrl.u32 %v856, 7
        %v858 = vsub.s32 %v855, %v857
        %v859 = vrot.slane %v851, %v858
        %v861 = vunpack.c.l.s4 1934713408
        %v862 = vunpack.c.0.s8 %v861
        %v863 = vlaneseq
        %v864 = vshrl.u32 %v863, 7
        %v865 = vsub.s32 %v862, %v864
        %v866 = vrot.slane %v852, %v865
        %v867 = vcombine.high %v859, 0
        %v868 = vcombine.high %v866, 0
        %v871 = vunpack.c.l.s4 1983009808
        %v872 = vunpack.c.0.s8 %v871
        %v873 = vlaneseq
        %v874 = vshrl.u32 %v873, 7
        %v875 = vsub.s32 %v872, %v874
        %v876 = vrot.slane %v828, %v875
        %v879 = vunpack.c.l.s4 1983009808
        %v880 = vunpack.c.0.s8 %v879
        %v881 = vlaneseq
        %v882 = vshrl.u32 %v881, 7
        %v883 = vsub.s32 %v880, %v882
        %v884 = vrot.slane %v834, %v883
        %v885 = vcombine.low %v876, %v884
        %v886 = vcombine.high %v876, %v884
        %v888 = vunpack.c.l.s4 1934713408
        %v889 = vunpack.c.0.s8 %v888
        %v890 = vlaneseq
        %v891 = vshrl.u32 %v890, 7
        %v892 = vsub.s32 %v889, %v891
        %v893 = vrot.slane %v885, %v892
        %v895 = vunpack.c.l.s4 1934713408
        %v896 = vunpack.c.0.s8 %v895
        %v897 = vlaneseq
        %v898 = vshrl.u32 %v897, 7
        %v899 = vsub.s32 %v896, %v898
        %v900 = vrot.slane %v886, %v899
        %v901 = vcombine.high %v893, 0
        %v902 = vcombine.high %v900, 0
        %v903 = vcombine.low %v859, %v866
        %v905 = vunpack.c.l.s4 1983009808
        %v906 = vunpack.c.0.s8 %v905
        %v907 = vlaneseq
        %v908 = vshrl.u32 %v907, 7
        %v909 = vsub.s32 %v906, %v908
        %v910 = vrot.slane %v903, %v909
        %v911 = vcombine.low %v867, %v868
        %v913 = vunpack.c.l.s4 1983009808
        %v914 = vunpack.c.0.s8 %v913
        %v915 = vlaneseq
        %v916 = vshrl.u32 %v915, 7
        %v917 = vsub.s32 %v914, %v916
        %v918 = vrot.slane %v911, %v917
        %v919 = vcombine.low %v910, %v918
        %v921 = vunpack.c.l.s4 1934713408
        %v922 = vunpack.c.0.s8 %v921
        %v923 = vlaneseq
        %v924 = vshrl.u32 %v923, 7
        %v925 = vsub.s32 %v922, %v924
        %v926 = vrot.slane %v919, %v925
        %v927 = vcombine.high %v926, 0
        %v928 = vcombine.low %v893, %v900
        %v930 = vunpack.c.l.s4 1983009808
        %v931 = vunpack.c.0.s8 %v930
        %v932 = vlaneseq
        %v933 = vshrl.u32 %v932, 7
        %v934 = vsub.s32 %v931, %v933
        %v935 = vrot.slane %v928, %v934
        %v936 = vcombine.low %v901, %v902
        %v938 = vunpack.c.l.s4 1983009808
        %v939 = vunpack.c.0.s8 %v938
        %v940 = vlaneseq
        %v941 = vshrl.u32 %v940, 7
        %v942 = vsub.s32 %v939, %v941
        %v943 = vrot.slane %v936, %v942
        %v944 = vcombine.low %v935, %v943
        %v946 = vunpack.c.l.s4 1934713408
        %v947 = vunpack.c.0.s8 %v946
        %v948 = vlaneseq
        %v949 = vshrl.u32 %v948, 7
        %v950 = vsub.s32 %v947, %v949
        %v951 = vrot.slane %v944, %v950
        %v952 = vcombine.high %v951, 0
        %v955 = vpack.i.b16 %v951, %v926
        %v957 = vshrl.u32 %v926, 16
        %v958 = vshrl.u32 %v951, 16
        %v959 = vpack.i.b16 %v958, %v957
        %v963 = vpack.i.b16 %v952, %v927
        %v965 = vshrl.u32 %v927, 16
        %v966 = vshrl.u32 %v952, 16
        %v967 = vpack.i.b16 %v966, %v965
        %969 = vst.msk [vmem:[#allocation4] sm:$0xf] %vm652, %v955
        %970 = vst.msk [vmem:[#allocation4 + $0x4] sm:$0xf] %vm652, %v959
        %971 = vst.msk [vmem:[#allocation4 + $0x8] sm:$0xf] %vm652, %v963
        %972 = vst.msk [vmem:[#allocation4 + $0xc] sm:$0xf] %vm652, %v967
        %s973 = smul.u32 %s31, 8
        %v974 = vlaneseq
        %v975 = vshrl.u32 %v974, 7
        %v976 = vstv %s973
        %v977 = vadd.s32 %v976, %v975
        %v978 = vlaneseq
        %v979 = vand.u32 %v978, 127
        %vm980 = vcmp.le.s32.totalorder %v979, %v977
        %v981 = vsel %vm980, 0.0, -1e+30
        loop: start=0, step=1, limit=4
        $region69: #{_block_forward_impl.3} parent=67 // loop_pre_header
          _
        $region70: #{_block_forward_impl.3} parent=67 // loop_header
          %s983 = sphi 0, %s987
          %p984 = scmp.ge.s32.totalorder %s983, 4
        $region71: #{_block_forward_impl.3} parent=67 // loop_header_branch
          %986 = sbr.rel (%p984) target = $region75
        $region72: #{_block_forward_impl.3} parent=67 // loop_body
          %s988 = smul.addr %s983, 4
          %s989 = scalar_lea.vmem [#allocation2], %s988
          %v990 = vld [vmem:[%s989] sm:$0xf]
          %s991 = smul.addr %s983, 4
          %s992 = scalar_lea.vmem [#allocation3], %s991
          %v993 = vld [vmem:[%s992] sm:$0xf]
          %vm994 = vcmask 64512
          %v996 = vsel %vm994, %v990, 0
          %v999 = vsel %vm994, %v993, 0
          %1001 = vmatprep.subr.bf16.mxu0 0
          %1002 = vmatpush1.bf16.xpose.msra.mxu0 %v999
          %1003 = vmatprep.subr.bf16.mxu0 0
          %1004 = vmatpush1.bf16.xpose.msra.mxu0 0
          %1005 = vmatprep.subr.bf16.mxu0 0
          %1006 = vmatpush1.bf16.xpose.msra.mxu0 0
          %1007 = vmatprep.subr.bf16.mxu0 0
          %1008 = vmatpush1.bf16.xpose.msra.mxu0 0
          %1009 = vmatprep.subr.bf16.mxu0 0
          %1010 = vmatpush1.bf16.xpose.msra.mxu0 0
          %1011 = vmatprep.subr.bf16.mxu0 0
          %1012 = vmatpush1.bf16.xpose.msra.mxu0 0
          %1013 = vmatprep.subr.bf16.mxu0 0
          %1014 = vmatpush1.bf16.xpose.msra.mxu0 0
          %1015 = vmatprep.subr.bf16.mxu0 0
          %1016 = vmatpush1.bf16.xpose.msra.mxu0 0
          %1017 = vmatprep.subr.bf16.mxu0 0
          %1018 = vmatpush1.bf16.xpose.msra.mxu0 0
          %1019 = vmatprep.subr.bf16.mxu0 0
          %1020 = vmatpush1.bf16.xpose.msra.mxu0 0
          %1021 = vmatprep.subr.bf16.mxu0 0
          %1022 = vmatpush1.bf16.xpose.msra.mxu0 0
          %1023 = vmatprep.subr.bf16.mxu0 0
          %1024 = vmatpush1.bf16.xpose.msra.mxu0 0
          %1025 = vmatprep.subr.bf16.mxu0 0
          %1026 = vmatpush1.bf16.xpose.msra.mxu0 0
          %1027 = vmatprep.subr.bf16.mxu0 0
          %1028 = vmatpush1.bf16.xpose.msra.mxu0 0
          %1029 = vmatprep.subr.bf16.mxu0 0
          %1030 = vmatpush1.bf16.xpose.msra.mxu0 0
          %1031 = vmatprep.subr.bf16.mxu0 0
          %1032 = vmatpush1.bf16.xpose.msra.mxu0 0
          %1033 = vmatprep.mubr.bf16.mxu0 0
          %1034 = vmatmul.mubr.bf16.gmra.mrb[0].mxu0 %v996
          %v1035 = vpop.f32.mrb[0].mxu0
          %v1036 = vadd.f32 %v981, %v1035
          %v1037 = vpop.f32.mrb[0].mxu0
          %v1038 = vpop.f32.mrb[0].mxu0
          %v1039 = vpop.f32.mrb[0].mxu0
          %1040 = vdwg.mxu0
          %v1041 = vsel %vm994, %v1036, -inf
          %1042 = vmax.xlane.f32.xlu0 %v1041
          %v1043 = vpop.xlane.xlu0 %1042
          %v1044 = vsub.f32 %v1036, %v1043
          %v1045 = vmul.f32 %v1044, 1.442695
          %v1046 = vpow.pop %v1045
          %v1047 = vsel %vm994, %v1046, 0.0
          %1048 = vadd.xlane.f32.xlu0 %v1047
          %v1049 = vpop.xlane.xlu0 %1048
          %v1050 = vrcp.pop %v1049
          %v1051 = vmul.f32 %v1049, %v1050
          %v1052 = vsub.f32 2.0, %v1051
          %v1053 = vmul.f32 %v1050, %v1052
          %v1054 = vmul.f32 %v1046, %v1053
          %v1055 = vpack.c.bf16 %v1054, %v1054
          %s1056 = smul.addr %s983, 4
          %s1057 = scalar_lea.vmem [#allocation4], %s1056
          %v1058 = vld [vmem:[%s1057] sm:$0xf]
          %v1060 = vsel %vm994, %v1055, 0
          %vm1062 = vcmask 1043456
          %v1064 = vsel %vm1062, %v1058, 0
          %1066 = vmatprep.subr.bf16.mxu0 0
          %1067 = vmatpush1.bf16.msra.mxu0 %v1064
          %1068 = vmatprep.subr.bf16.mxu0 0
          %1069 = vmatpush1.bf16.msra.mxu0 0
          %1070 = vmatprep.subr.bf16.mxu0 0
          %1071 = vmatpush1.bf16.msra.mxu0 0
          %1072 = vmatprep.subr.bf16.mxu0 0
          %1073 = vmatpush1.bf16.msra.mxu0 0
          %1074 = vmatprep.subr.bf16.mxu0 0
          %1075 = vmatpush1.bf16.msra.mxu0 0
          %1076 = vmatprep.subr.bf16.mxu0 0
          %1077 = vmatpush1.bf16.msra.mxu0 0
          %1078 = vmatprep.subr.bf16.mxu0 0
          %1079 = vmatpush1.bf16.msra.mxu0 0
          %1080 = vmatprep.subr.bf16.mxu0 0
          %1081 = vmatpush1.bf16.msra.mxu0 0
          %1082 = vmatprep.subr.bf16.mxu0 0
          %1083 = vmatpush1.bf16.msra.mxu0 0
          %1084 = vmatprep.subr.bf16.mxu0 0
          %1085 = vmatpush1.bf16.msra.mxu0 0
          %1086 = vmatprep.subr.bf16.mxu0 0
          %1087 = vmatpush1.bf16.msra.mxu0 0
          %1088 = vmatprep.subr.bf16.mxu0 0
          %1089 = vmatpush1.bf16.msra.mxu0 0
          %1090 = vmatprep.subr.bf16.mxu0 0
          %1091 = vmatpush1.bf16.msra.mxu0 0
          %1092 = vmatprep.subr.bf16.mxu0 0
          %1093 = vmatpush1.bf16.msra.mxu0 0
          %1094 = vmatprep.subr.bf16.mxu0 0
          %1095 = vmatpush1.bf16.msra.mxu0 0
          %1096 = vmatprep.subr.bf16.mxu0 0
          %1097 = vmatpush1.bf16.msra.mxu0 0
          %1098 = vmatprep.mubr.bf16.mxu0 0
          %1099 = vmatmul.mubr.bf16.gmra.mrb[0].mxu0 %v1060
          %v1100 = vpop.f32.mrb[0].mxu0
          %v1101 = vadd.f32 0.0, %v1100
          %v1102 = vpop.f32.mrb[0].mxu0
          %v1103 = vpop.f32.mrb[0].mxu0
          %v1104 = vpop.f32.mrb[0].mxu0
          %1105 = vdwg.mxu0
          %s1106 = smul.u32 %s983, 8
          %s1107 = scalar_lea.vmem [#allocation5], %s1106
          %1108 = vst.msk [vmem:[%s1107] sm:$0xff] %vm994, %v1101
        $region73: #{_block_forward_impl.3} parent=67 // loop_footer
          %s987 = sadd.s32 1, %s983
        $region74: #{_block_forward_impl.3} parent=67 // loop_footer_branch
          %982 = sbr.rel target = $region70
        $region75: #{_block_forward_impl.3} parent=67 // loop_exit
          _
        %v1109 = vld [vmem:[#allocation5] sm:$0xff]
        %v1110 = vld [vmem:[#allocation5 + $0x8] sm:$0xff]
        %v1111 = vld [vmem:[#allocation5 + $0x10] sm:$0xff]
        %v1112 = vld [vmem:[#allocation5 + $0x18] sm:$0xff]
        %v1113 = vcombine.low %v1109, %v1111
        %v1114 = vcombine.high %v1109, %v1111
        %v1116 = vunpack.c.l.s4 1983009808
        %v1117 = vunpack.c.0.s8 %v1116
        %v1118 = vlaneseq
        %v1119 = vshrl.u32 %v1118, 7
        %v1120 = vsub.s32 %v1117, %v1119
        %v1121 = vrot.slane %v1113, %v1120
        %v1123 = vunpack.c.l.s4 1983009808
        %v1124 = vunpack.c.0.s8 %v1123
        %v1125 = vlaneseq
        %v1126 = vshrl.u32 %v1125, 7
        %v1127 = vsub.s32 %v1124, %v1126
        %v1128 = vrot.slane %v1114, %v1127
        %v1129 = vcombine.low %v1110, %v1112
        %v1130 = vcombine.high %v1110, %v1112
        %v1132 = vunpack.c.l.s4 1983009808
        %v1133 = vunpack.c.0.s8 %v1132
        %v1134 = vlaneseq
        %v1135 = vshrl.u32 %v1134, 7
        %v1136 = vsub.s32 %v1133, %v1135
        %v1137 = vrot.slane %v1129, %v1136
        %v1139 = vunpack.c.l.s4 1983009808
        %v1140 = vunpack.c.0.s8 %v1139
        %v1141 = vlaneseq
        %v1142 = vshrl.u32 %v1141, 7
        %v1143 = vsub.s32 %v1140, %v1142
        %v1144 = vrot.slane %v1130, %v1143
        %v1145 = vcombine.low %v1121, %v1137
        %v1146 = vcombine.high %v1121, %v1137
        %v1148 = vunpack.c.l.s4 1934713408
        %v1149 = vunpack.c.0.s8 %v1148
        %v1150 = vlaneseq
        %v1151 = vshrl.u32 %v1150, 7
        %v1152 = vsub.s32 %v1149, %v1151
        %v1153 = vrot.slane %v1145, %v1152
        %v1155 = vunpack.c.l.s4 1934713408
        %v1156 = vunpack.c.0.s8 %v1155
        %v1157 = vlaneseq
        %v1158 = vshrl.u32 %v1157, 7
        %v1159 = vsub.s32 %v1156, %v1158
        %v1160 = vrot.slane %v1146, %v1159
        %v1161 = vcombine.low %v1128, %v1144
        %v1162 = vcombine.high %v1128, %v1144
        %v1164 = vunpack.c.l.s4 1934713408
        %v1165 = vunpack.c.0.s8 %v1164
        %v1166 = vlaneseq
        %v1167 = vshrl.u32 %v1166, 7
        %v1168 = vsub.s32 %v1165, %v1167
        %v1169 = vrot.slane %v1161, %v1168
        %v1171 = vunpack.c.l.s4 1934713408
        %v1172 = vunpack.c.0.s8 %v1171
        %v1173 = vlaneseq
        %v1174 = vshrl.u32 %v1173, 7
        %v1175 = vsub.s32 %v1172, %v1174
        %v1176 = vrot.slane %v1162, %v1175
        %v1177 = vcombine.high %v1153, 0.0
        %v1178 = vcombine.high %v1160, 0.0
        %v1179 = vcombine.high %v1169, 0.0
        %v1180 = vcombine.high %v1176, 0.0
        %v1181 = vcombine.low %v1153, %v1160
        %v1183 = vunpack.c.l.s4 1983009808
        %v1184 = vunpack.c.0.s8 %v1183
        %v1185 = vlaneseq
        %v1186 = vshrl.u32 %v1185, 7
        %v1187 = vsub.s32 %v1184, %v1186
        %v1188 = vrot.slane %v1181, %v1187
        %v1189 = vcombine.low %v1177, %v1178
        %v1191 = vunpack.c.l.s4 1983009808
        %v1192 = vunpack.c.0.s8 %v1191
        %v1193 = vlaneseq
        %v1194 = vshrl.u32 %v1193, 7
        %v1195 = vsub.s32 %v1192, %v1194
        %v1196 = vrot.slane %v1189, %v1195
        %v1197 = vcombine.low %v1169, %v1176
        %v1199 = vunpack.c.l.s4 1983009808
        %v1200 = vunpack.c.0.s8 %v1199
        %v1201 = vlaneseq
        %v1202 = vshrl.u32 %v1201, 7
        %v1203 = vsub.s32 %v1200, %v1202
        %v1204 = vrot.slane %v1197, %v1203
        %v1205 = vcombine.low %v1179, %v1180
        %v1207 = vunpack.c.l.s4 1983009808
        %v1208 = vunpack.c.0.s8 %v1207
        %v1209 = vlaneseq
        %v1210 = vshrl.u32 %v1209, 7
        %v1211 = vsub.s32 %v1208, %v1210
        %v1212 = vrot.slane %v1205, %v1211
        %v1213 = vcombine.low %v1188, %v1196
        %v1214 = vcombine.high %v1188, %v1196
        %v1216 = vunpack.c.l.s4 1934713408
        %v1217 = vunpack.c.0.s8 %v1216
        %v1218 = vlaneseq
        %v1219 = vshrl.u32 %v1218, 7
        %v1220 = vsub.s32 %v1217, %v1219
        %v1221 = vrot.slane %v1213, %v1220
        %v1223 = vunpack.c.l.s4 1934713408
        %v1224 = vunpack.c.0.s8 %v1223
        %v1225 = vlaneseq
        %v1226 = vshrl.u32 %v1225, 7
        %v1227 = vsub.s32 %v1224, %v1226
        %v1228 = vrot.slane %v1214, %v1227
        %v1229 = vcombine.low %v1204, %v1212
        %v1230 = vcombine.high %v1204, %v1212
        %v1232 = vunpack.c.l.s4 1934713408
        %v1233 = vunpack.c.0.s8 %v1232
        %v1234 = vlaneseq
        %v1235 = vshrl.u32 %v1234, 7
        %v1236 = vsub.s32 %v1233, %v1235
        %v1237 = vrot.slane %v1229, %v1236
        %v1239 = vunpack.c.l.s4 1934713408
        %v1240 = vunpack.c.0.s8 %v1239
        %v1241 = vlaneseq
        %v1242 = vshrl.u32 %v1241, 7
        %v1243 = vsub.s32 %v1240, %v1242
        %v1244 = vrot.slane %v1230, %v1243
        %v1245 = vcombine.low %v1221, %v1237
        %v1246 = vcombine.high %v1221, %v1237
        %v1247 = vcombine.low %v1228, %v1244
        %v1248 = vcombine.high %v1228, %v1244
        %1250 = vrot.lane.b32.xlu0 %v1246, 8
        %v1251 = vpop.permute.xlu0 %1250
        %1254 = vrot.lane.b32.xlu0 %v1247, 16
        %v1255 = vpop.permute.xlu0 %1254
        %1258 = vrot.lane.b32.xlu0 %v1248, 24
        %v1259 = vpop.permute.xlu0 %1258
        %vm1261 = vcmask 64512
        %v1262 = vsel %vm1261, %v1245, %v1251
        %vm1263 = vcmask 130048
        %v1264 = vsel %vm1263, %v1262, %v1255
        %vm1265 = vcmask 195584
        %v1266 = vsel %vm1265, %v1264, %v1259
        %v1267 = vpack.c.bf16 %v1266, %v1266
        %v1268 = vld [vmem:[%s4] sm:$0xf]
        %v1269 = vld [vmem:[%s4 + $0x4] sm:$0xf]
        %v1270 = vld [vmem:[%s4 + $0x8] sm:$0xf]
        %v1271 = vld [vmem:[%s4 + $0xc] sm:$0xf]
        %v1272 = vld [vmem:[%s5] sm:$0x1]
        %v1274 = vlaneseq
        %v1275 = vshrl.u32 %v1274, 7
        %v1276 = vsub.s32 0, %v1275
        %v1277 = vrot.slane %v1272, %v1276
        %v1283 = vunpack.c.l.b16 %v1268
        %v1284 = vunpack.c.l.b16 %v1269
        %v1285 = vunpack.c.l.b16 %v1270
        %v1286 = vunpack.c.l.b16 %v1271
        %v1287 = vpack.c.b16 %v1284, %v1283
        %v1288 = vpack.c.b16 %v1286, %v1285
        %vm1291 = vcmask 261120
        %v1293 = vsel %vm1291, %v1267, 0
        %1295 = vmatprep.subr.bf16.mxu0 0
        %1296 = vmatpush1.bf16.msra.mxu0 %v1287
        %1297 = vmatprep.subr.bf16.mxu0 0
        %1298 = vmatpush1.bf16.msra.mxu0 %v1288
        %1299 = vmatprep.subr.bf16.mxu0 0
        %1300 = vmatpush1.bf16.msra.mxu0 0
        %1301 = vmatprep.subr.bf16.mxu0 0
        %1302 = vmatpush1.bf16.msra.mxu0 0
        %1303 = vmatprep.subr.bf16.mxu0 0
        %1304 = vmatpush1.bf16.msra.mxu0 0
        %1305 = vmatprep.subr.bf16.mxu0 0
        %1306 = vmatpush1.bf16.msra.mxu0 0
        %1307 = vmatprep.subr.bf16.mxu0 0
        %1308 = vmatpush1.bf16.msra.mxu0 0
        %1309 = vmatprep.subr.bf16.mxu0 0
        %1310 = vmatpush1.bf16.msra.mxu0 0
        %1311 = vmatprep.subr.bf16.mxu0 0
        %1312 = vmatpush1.bf16.msra.mxu0 0
        %1313 = vmatprep.subr.bf16.mxu0 0
        %1314 = vmatpush1.bf16.msra.mxu0 0
        %1315 = vmatprep.subr.bf16.mxu0 0
        %1316 = vmatpush1.bf16.msra.mxu0 0
        %1317 = vmatprep.subr.bf16.mxu0 0
        %1318 = vmatpush1.bf16.msra.mxu0 0
        %1319 = vmatprep.subr.bf16.mxu0 0
        %1320 = vmatpush1.bf16.msra.mxu0 0
        %1321 = vmatprep.subr.bf16.mxu0 0
        %1322 = vmatpush1.bf16.msra.mxu0 0
        %1323 = vmatprep.subr.bf16.mxu0 0
        %1324 = vmatpush1.bf16.msra.mxu0 0
        %1325 = vmatprep.subr.bf16.mxu0 0
        %1326 = vmatpush1.bf16.msra.mxu0 0
        %1327 = vmatprep.mubr.bf16.mxu0 0
        %1328 = vmatmul.mubr.bf16.gmra.mrb[0].mxu0 %v1293
        %v1329 = vpop.f32.mrb[0].mxu0
        %v1330 = vadd.f32 %v1277, %v1329
        %v1331 = vpop.f32.mrb[0].mxu0
        %v1332 = vpop.f32.mrb[0].mxu0
        %v1333 = vpop.f32.mrb[0].mxu0
        %1334 = vdwg.mxu0
        %v1335 = vadd.f32 %v497, %v1330
        %v1336 = vld [vmem:[%s6] sm:$0x1]
        %v1337 = vld [vmem:[%s7] sm:$0x1]
        %v1338 = vsel %vm1291, %v1335, 0.0
        %1339 = vadd.xlane.f32.xlu0 %v1338
        %v1340 = vpop.xlane.xlu0 %1339
        %v1341 = vrcp.pop 32.0
        %v1342 = vmul.f32 %v1340, %v1341
        %v1343 = vsub.f32 %v1335, %v1342
        %v1344 = vmul.f32 %v1343, %v1343
        %v1345 = vsel %vm1291, %v1344, 0.0
        %1346 = vadd.xlane.f32.xlu0 %v1345
        %v1347 = vpop.xlane.xlu0 %1346
        %v1348 = vmul.f32 %v1347, %v1341
        %v1349 = vadd.f32 %v1348, 1e-05
        %v1350 = vrsqrt.pop %v1349
        %v1351 = vmul.f32 %v1343, %v1350
        %v1353 = vlaneseq
        %v1354 = vshrl.u32 %v1353, 7
        %v1355 = vsub.s32 0, %v1354
        %v1356 = vrot.slane %v1336, %v1355
        %v1358 = vmul.f32 %v1351, %v1356
        %v1360 = vlaneseq
        %v1361 = vshrl.u32 %v1360, 7
        %v1362 = vsub.s32 0, %v1361
        %v1363 = vrot.slane %v1337, %v1362
        %v1365 = vadd.f32 %v1358, %v1363
        %v1366 = vpack.c.bf16 %v1365, %v1365
        %v1367 = vld [vmem:[%s8] sm:$0xf]
        %v1368 = vld [vmem:[%s8 + $0x4] sm:$0xf]
        %v1369 = vld [vmem:[%s8 + $0x8] sm:$0xf]
        %v1370 = vld [vmem:[%s8 + $0xc] sm:$0xf]
        %v1371 = vld [vmem:[%s9] sm:$0x1]
        %v1373 = vlaneseq
        %v1374 = vshrl.u32 %v1373, 7
        %v1375 = vsub.s32 0, %v1374
        %v1376 = vrot.slane %v1371, %v1375
        %v1382 = vunpack.c.l.b16 %v1367
        %v1383 = vunpack.c.l.b16 %v1368
        %v1384 = vunpack.c.l.b16 %v1369
        %v1385 = vunpack.c.l.b16 %v1370
        %v1386 = vpack.c.b16 %v1383, %v1382
        %v1387 = vpack.c.b16 %v1385, %v1384
        %v1391 = vsel %vm1291, %v1366, 0
        %1393 = vmatprep.subr.bf16.mxu0 0
        %1394 = vmatpush1.bf16.msra.mxu0 %v1386
        %1395 = vmatprep.subr.bf16.mxu0 0
        %1396 = vmatpush1.bf16.msra.mxu0 %v1387
        %1397 = vmatprep.subr.bf16.mxu0 0
        %1398 = vmatpush1.bf16.msra.mxu0 0
        %1399 = vmatprep.subr.bf16.mxu0 0
        %1400 = vmatpush1.bf16.msra.mxu0 0
        %1401 = vmatprep.subr.bf16.mxu0 0
        %1402 = vmatpush1.bf16.msra.mxu0 0
        %1403 = vmatprep.subr.bf16.mxu0 0
        %1404 = vmatpush1.bf16.msra.mxu0 0
        %1405 = vmatprep.subr.bf16.mxu0 0
        %1406 = vmatpush1.bf16.msra.mxu0 0
        %1407 = vmatprep.subr.bf16.mxu0 0
        %1408 = vmatpush1.bf16.msra.mxu0 0
        %1409 = vmatprep.subr.bf16.mxu0 0
        %1410 = vmatpush1.bf16.msra.mxu0 0
        %1411 = vmatprep.subr.bf16.mxu0 0
        %1412 = vmatpush1.bf16.msra.mxu0 0
        %1413 = vmatprep.subr.bf16.mxu0 0
        %1414 = vmatpush1.bf16.msra.mxu0 0
        %1415 = vmatprep.subr.bf16.mxu0 0
        %1416 = vmatpush1.bf16.msra.mxu0 0
        %1417 = vmatprep.subr.bf16.mxu0 0
        %1418 = vmatpush1.bf16.msra.mxu0 0
        %1419 = vmatprep.subr.bf16.mxu0 0
        %1420 = vmatpush1.bf16.msra.mxu0 0
        %1421 = vmatprep.subr.bf16.mxu0 0
        %1422 = vmatpush1.bf16.msra.mxu0 0
        %1423 = vmatprep.subr.bf16.mxu0 0
        %1424 = vmatpush1.bf16.msra.mxu0 0
        %1425 = vmatprep.mubr.bf16.mxu0 0
        %1426 = vmatmul.mubr.bf16.gmra.mrb[0].mxu0 %v1391
        %v1427 = vpop.f32.mrb[0].mxu0
        %v1428 = vadd.f32 %v1376, %v1427
        %v1429 = vpop.f32.mrb[0].mxu0
        %v1430 = vpop.f32.mrb[0].mxu0
        %v1431 = vpop.f32.mrb[0].mxu0
        %1432 = vdwg.mxu0
        %v1433 = vmul.f32 %v1428, 0.5
        %v1434 = vmul.f32 %v1428, 0.044715
        %v1435 = vmul.f32 %v1434, %v1428
        %v1436 = vmul.f32 %v1435, %v1428
        %v1437 = vadd.f32 %v1428, %v1436
        %v1438 = vmul.f32 %v1437, 0.7978846
        %v1439 = vtanh.pop %v1438
        %v1440 = vadd.f32 %v1439, 1.0
        %v1441 = vmul.f32 %v1433, %v1440
        %v1442 = vpack.c.bf16 %v1441, %v1441
        %v1443 = vld [vmem:[%s10] sm:$0xf]
        %v1444 = vld [vmem:[%s10 + $0x4] sm:$0xf]
        %v1445 = vld [vmem:[%s10 + $0x8] sm:$0xf]
        %v1446 = vld [vmem:[%s10 + $0xc] sm:$0xf]
        %v1447 = vld [vmem:[%s10 + $0x10] sm:$0xf]
        %v1448 = vld [vmem:[%s10 + $0x14] sm:$0xf]
        %v1449 = vld [vmem:[%s10 + $0x18] sm:$0xf]
        %v1450 = vld [vmem:[%s10 + $0x1c] sm:$0xf]
        %v1451 = vld [vmem:[%s10 + $0x20] sm:$0xf]
        %v1452 = vld [vmem:[%s10 + $0x24] sm:$0xf]
        %v1453 = vld [vmem:[%s10 + $0x28] sm:$0xf]
        %v1454 = vld [vmem:[%s10 + $0x2c] sm:$0xf]
        %v1455 = vld [vmem:[%s10 + $0x30] sm:$0xf]
        %v1456 = vld [vmem:[%s10 + $0x34] sm:$0xf]
        %v1457 = vld [vmem:[%s10 + $0x38] sm:$0xf]
        %v1458 = vld [vmem:[%s10 + $0x3c] sm:$0xf]
        %v1459 = vld [vmem:[%s11] sm:$0x1]
        %v1461 = vlaneseq
        %v1462 = vshrl.u32 %v1461, 7
        %v1463 = vsub.s32 0, %v1462
        %v1464 = vrot.slane %v1459, %v1463
        %v1482 = vunpack.c.l.b16 %v1443
        %v1483 = vunpack.c.l.b16 %v1444
        %v1484 = vunpack.c.l.b16 %v1445
        %v1485 = vunpack.c.l.b16 %v1446
        %v1486 = vunpack.c.l.b16 %v1447
        %v1487 = vunpack.c.l.b16 %v1448
        %v1488 = vunpack.c.l.b16 %v1449
        %v1489 = vunpack.c.l.b16 %v1450
        %v1490 = vunpack.c.l.b16 %v1451
        %v1491 = vunpack.c.l.b16 %v1452
        %v1492 = vunpack.c.l.b16 %v1453
        %v1493 = vunpack.c.l.b16 %v1454
        %v1494 = vunpack.c.l.b16 %v1455
        %v1495 = vunpack.c.l.b16 %v1456
        %v1496 = vunpack.c.l.b16 %v1457
        %v1497 = vunpack.c.l.b16 %v1458
        %v1498 = vpack.c.b16 %v1483, %v1482
        %v1499 = vpack.c.b16 %v1485, %v1484
        %v1500 = vpack.c.b16 %v1487, %v1486
        %v1501 = vpack.c.b16 %v1489, %v1488
        %v1502 = vpack.c.b16 %v1491, %v1490
        %v1503 = vpack.c.b16 %v1493, %v1492
        %v1504 = vpack.c.b16 %v1495, %v1494
        %v1505 = vpack.c.b16 %v1497, %v1496
        %1514 = vmatprep.subr.bf16.mxu0 0
        %1515 = vmatpush1.bf16.msra.mxu0 %v1498
        %1516 = vmatprep.subr.bf16.mxu0 0
        %1517 = vmatpush1.bf16.msra.mxu0 %v1499
        %1518 = vmatprep.subr.bf16.mxu0 0
        %1519 = vmatpush1.bf16.msra.mxu0 %v1500
        %1520 = vmatprep.subr.bf16.mxu0 0
        %1521 = vmatpush1.bf16.msra.mxu0 %v1501
        %1522 = vmatprep.subr.bf16.mxu0 0
        %1523 = vmatpush1.bf16.msra.mxu0 %v1502
        %1524 = vmatprep.subr.bf16.mxu0 0
        %1525 = vmatpush1.bf16.msra.mxu0 %v1503
        %1526 = vmatprep.subr.bf16.mxu0 0
        %1527 = vmatpush1.bf16.msra.mxu0 %v1504
        %1528 = vmatprep.subr.bf16.mxu0 0
        %1529 = vmatpush1.bf16.msra.mxu0 %v1505
        %1530 = vmatprep.subr.bf16.mxu0 0
        %1531 = vmatpush1.bf16.msra.mxu0 0
        %1532 = vmatprep.subr.bf16.mxu0 0
        %1533 = vmatpush1.bf16.msra.mxu0 0
        %1534 = vmatprep.subr.bf16.mxu0 0
        %1535 = vmatpush1.bf16.msra.mxu0 0
        %1536 = vmatprep.subr.bf16.mxu0 0
        %1537 = vmatpush1.bf16.msra.mxu0 0
        %1538 = vmatprep.subr.bf16.mxu0 0
        %1539 = vmatpush1.bf16.msra.mxu0 0
        %1540 = vmatprep.subr.bf16.mxu0 0
        %1541 = vmatpush1.bf16.msra.mxu0 0
        %1542 = vmatprep.subr.bf16.mxu0 0
        %1543 = vmatpush1.bf16.msra.mxu0 0
        %1544 = vmatprep.subr.bf16.mxu0 0
        %1545 = vmatpush1.bf16.msra.mxu0 0
        %1546 = vmatprep.mubr.bf16.mxu0 0
        %1547 = vmatmul.mubr.bf16.gmra.mrb[0].mxu0 %v1442
        %v1548 = vpop.f32.mrb[0].mxu0
        %v1549 = vadd.f32 %v1464, %v1548
        %v1550 = vpop.f32.mrb[0].mxu0
        %v1551 = vpop.f32.mrb[0].mxu0
        %v1552 = vpop.f32.mrb[0].mxu0
        %1553 = vdwg.mxu0
        %v1554 = vadd.f32 %v1335, %v1549
        %1555 = vst.msk [vmem:[%s473] sm:$0xff] %vm1291, %v1554
        %s1556 = sand.u32 %s324, 1
        %s1557 = scalar_lea.sflag [#allocation7], %s1556
        %s1558 = sand.u32 %s324, 1
        %s1559 = smul.addr %s1558, 8
        %s1560 = scalar_lea.vmem [#allocation6], %s1559
        // Predicated region
        $region76: #{_block_forward_impl.3} parent=67 // pred_check
          %p1561 = pneg %p334
        $region77: #{_block_forward_impl.3} parent=67 // pred_check_branch
          %1563 = sbr.rel (%p1561) target = $region79
        $region78: #{_block_forward_impl.3} parent=67 // pred_region
          %s1565 = ssub.s32 128, 128
          %1566 = vsyncadd %s1557, %s1565
          %s1567 = sadd.s32 %s31, %s30
          %s1568 = smul.addr %s1567, 128
          %s1569 = scalar_lea.hbm %s12, %s1568
          %s1571 = sshll.u32 %s1560, 4
          %s1572 = int_to_ptr.vmem [resolvable:$true] %s1571
          %1574 = dma.vmem_to_hbm [thread:$0]  %s1572, 128, %s1569, %s1557
        $region79: #{_block_forward_impl.3} parent=67 // pred_fallthru
          _
      $region68: #{_block_forward_impl.3} parent=5 // pred_fallthru
        _
      %p1575 = scmp.le.s32.totalorder 2, %s21
      // Predicated region
      $region80: #{_block_forward_impl.3} parent=5 // pred_check
        %p1576 = pneg %p1575
      $region81: #{_block_forward_impl.3} parent=5 // pred_check_branch
        %1578 = sbr.rel (%p1576) target = $region83
      $region82: #{_block_forward_impl.3} parent=5 // pred_region
        %s1579 = ssub.s32 %s21, 2
        // Predicated region
        $region84: #{_block_forward_impl.3} parent=82 // pred_check
          %p1580 = pneg %p340
        $region85: #{_block_forward_impl.3} parent=82 // pred_check_branch
          %1582 = sbr.rel (%p1580) target = $region87
        $region86: #{_block_forward_impl.3} parent=82 // pred_region
          %s1583 = sand.u32 %s325, 1
          %s1584 = scalar_lea.sflag [#allocation7], %s1583
          %s1585 = sand.u32 %s325, 1
          %s1586 = smul.addr %s1585, 8
          %s1587 = scalar_lea.vmem [#allocation6], %s1586
          %1588 = dma.done %s1584, 128
        $region87: #{_block_forward_impl.3} parent=82 // pred_fallthru
          _
      $region83: #{_block_forward_impl.3} parent=5 // pred_fallthru
        _
    $region6: #{_block_forward_impl.3} parent=1 // loop_footer
      %s25 = sadd.s32 1, %s21
    $region7: #{_block_forward_impl.3} parent=1 // loop_footer_branch
      %20 = sbr.rel target = $region3
    $region8: #{_block_forward_impl.3} parent=1 // loop_exit
      _
    %1589 = vsyncpa [#allocation7], 1
    %s1590 = scalar_lea.sflag [#allocation7], 1
    %1591 = vsyncpa %s1590, 1

</llo_original>
